<compile_context>
chip_gen: v6e
topology: v6e:2x2x1
jax: 0.10.0
libtpu: 0.0.40
codegen_flags: <defaults>
</compile_context>

<pallas_src>
import math
import functools

import jax
import jax.numpy as jnp
from jax.experimental import pallas as pl
from jax.experimental.pallas import tpu as pltpu


# ----------------------------- Pallas kernel -------------------------------

def encoder_layer_kernel(q_ref, k_ref, v_ref,                 # (S,E) f32 / bf16 / bf16
                         wq_ref, wk_ref, wv_ref,              # (E,E) bf16 each
                         bq_ref, bk_ref, bv_ref,              # (1,E) f32 each
                         wo_ref, bo_ref,                      # (E,E) bf16, (1,E) f32
                         g1_ref, be1_ref,                     # layernorm1 (1,E) f32
                         w1_ref, b1_ref,                      # ffn lin1 (E,4E) bf16, (1,4E) f32
                         w2_ref, b2_ref,                      # ffn lin2 (4E,E) bf16, (E,) -> (1,E) f32
                         g2_ref, be2_ref,                     # layernorm2 (1,E) f32
                         o_ref,
                         *, num_heads, eps):
    xq = q_ref[...]                                           # (S, E) f32 (residual)
    S, E = xq.shape
    hd = E // num_heads

    # ---- QKV projections (bf16 MXU operands, f32 accumulate).
    #      1/sqrt(hd) is already folded into wq/bq on the host.
    Q = jnp.dot(xq.astype(jnp.bfloat16), wq_ref[...],
                preferred_element_type=jnp.float32) + bq_ref[0]
    K = jnp.dot(k_ref[...], wk_ref[...],
                preferred_element_type=jnp.float32) + bk_ref[0]
    V = jnp.dot(v_ref[...], wv_ref[...],
                preferred_element_type=jnp.float32) + bv_ref[0]

    # Cast once; the head loop only indexes these bf16 slabs.
    Qb = Q.astype(jnp.bfloat16)
    Kb = K.astype(jnp.bfloat16)
    Vb = V.astype(jnp.bfloat16)

    # ---- per-head attention (no cross-batch mask needed: one batch per grid
    #      step).  Contexts are concatenated and pushed through a single
    #      full-depth out-projection below.
    ctx_heads = []
    for h in range(num_heads):
        sl = slice(h * hd, (h + 1) * hd)
        # contract last dims directly -> no explicit transpose of K
        s = jax.lax.dot_general(Qb[:, sl], Kb[:, sl],
                                (((1,), (1,)), ((), ())),
                                preferred_element_type=jnp.float32)   # (S, S)
        s = s - jnp.max(s, axis=-1, keepdims=True)
        p = jnp.exp(s)
        p = p * pl.reciprocal(jnp.sum(p, axis=-1, keepdims=True), approx=True)
        ctx_heads.append(jnp.dot(p.astype(jnp.bfloat16), Vb[:, sl],
                                 preferred_element_type=jnp.float32))  # (S, hd)
    ctx = jnp.concatenate(ctx_heads, axis=-1)                          # (S, E) f32
    attn = jnp.dot(ctx.astype(jnp.bfloat16), wo_ref[...],
                   preferred_element_type=jnp.float32) + bo_ref[0]     # one K=E matmul

    # ---- residual + LayerNorm 1 (f32 VPU math)
    x = xq + attn
    mu = jnp.mean(x, axis=-1, keepdims=True)
    var = jnp.mean((x - mu) ** 2, axis=-1, keepdims=True)
    x = (x - mu) * jax.lax.rsqrt(var + eps) * g1_ref[0] + be1_ref[0]

    # ---- FFN: Linear(E, 4E) -> ReLU -> Linear(4E, E)
    h1 = jnp.dot(x.astype(jnp.bfloat16), w1_ref[...],
                 preferred_element_type=jnp.float32) + b1_ref[0]
    h1 = jnp.maximum(h1, 0.0)
    ffn = jnp.dot(h1.astype(jnp.bfloat16), w2_ref[...],
                  preferred_element_type=jnp.float32) + b2_ref[0]

    # ---- residual + LayerNorm 2
    y = x + ffn
    mu2 = jnp.mean(y, axis=-1, keepdims=True)
    var2 = jnp.mean((y - mu2) ** 2, axis=-1, keepdims=True)
    y = (y - mu2) * jax.lax.rsqrt(var2 + eps) * g2_ref[0] + be2_ref[0]

    o_ref[...] = y.astype(o_ref.dtype)


# ------------------------ one-time host-side weight prep --------------------

def prepare_params(params, *, num_heads):
    """Split the fused QKV projection, fold 1/sqrt(head_dim) into the Q part,
    and cast MXU weights to bf16.  Call once; reuse the result every step so
    this prep does not re-run as per-call XLA ops."""
    E = params["wqkv"].shape[0]
    hd = E // num_heads
    scale = 1.0 / math.sqrt(hd)
    wqkv, bqkv = params["wqkv"], params["bqkv"]
    f32 = jnp.float32
    return {
        "wq": (wqkv[:, 0 * E:1 * E] * scale).astype(jnp.bfloat16),
        "wk": wqkv[:, 1 * E:2 * E].astype(jnp.bfloat16),
        "wv": wqkv[:, 2 * E:3 * E].astype(jnp.bfloat16),
        "bq": (bqkv[:, 0 * E:1 * E] * scale).astype(f32),
        "bk": bqkv[:, 1 * E:2 * E].astype(f32),
        "bv": bqkv[:, 2 * E:3 * E].astype(f32),
        "wo": params["wo"].astype(jnp.bfloat16),
        "bo": params["bo"].astype(f32),
        "g1": params["g1"].astype(f32),
        "be1": params["be1"].astype(f32),
        "w1": params["w1"].astype(jnp.bfloat16),
        "b1": params["b1"].astype(f32),
        "w2": params["w2"].astype(jnp.bfloat16),
        "b2": params["b2"].astype(f32),
        "g2": params["g2"].astype(f32),
        "be2": params["be2"].astype(f32),
    }


# ------------------------------ wrapper -------------------------------------

def encoder_layer(q, k, v, prep, *, num_heads, eps=1e-5):
    B, S, E = q.shape

    # k/v only feed matmuls -> ship them as bf16 (half the activation DMA);
    # q stays f32 for the residual.
    k_bf16 = k.astype(jnp.bfloat16)
    v_bf16 = v.astype(jnp.bfloat16)

    weights = [
        prep["wq"], prep["wk"], prep["wv"],
        prep["bq"], prep["bk"], prep["bv"],
        prep["wo"], prep["bo"],
        prep["g1"], prep["be1"],
        prep["w1"], prep["b1"],
        prep["w2"], prep["b2"],
        prep["g2"], prep["be2"],
    ]

    def act_spec():
        # one batch's (S, E) slab per grid step; leading dim squeezed away
        return pl.BlockSpec((None, S, E), lambda b: (b, 0, 0))

    def pinned(shape):
        nd = len(shape)
        return pl.BlockSpec(shape, lambda b, _nd=nd: (0,) * _nd)

    in_specs = [act_spec(), act_spec(), act_spec()] + [pinned(w.shape) for w in weights]

    # Explicit scoped-VMEM budget: pinned weights + double-buffered activation
    # blocks + in-kernel intermediates (Q/K/V slabs, one (S,S) score, h1).
    weight_bytes = sum(int(w.size) * w.dtype.itemsize for w in weights)
    act_bytes = S * E * (4 + 2 + 2 + q.dtype.itemsize)          # q,k,v in + out block
    interm_bytes = (3 * S * E + S * S + 4 * E * S + 3 * S * E) * 4
    vmem_limit = int(min(2 * weight_bytes + 2 * act_bytes + 2 * interm_bytes + (2 << 20),
                         64 << 20))

    kernel = functools.partial(encoder_layer_kernel, num_heads=num_heads, eps=eps)

    out = pl.pallas_call(
        kernel,
        out_shape=jax.ShapeDtypeStruct((B, S, E), q.dtype),
        grid=(B,),
        in_specs=in_specs,
        out_specs=pl.BlockSpec((None, S, E), lambda b: (b, 0, 0)),
        compiler_params=pltpu.CompilerParams(
            dimension_semantics=("parallel",),       # batches split across TCs on v7x
            vmem_limit_bytes=vmem_limit,
        ),
    )(q, k_bf16, v_bf16, *weights)
    return out


# --------------------------- pure-JAX reference ------------------------------

def encoder_layer_ref(q, k, v, params, *, num_heads, eps=1e-5):
    B, S, E = q.shape
    hd = E // num_heads
    wqkv, bqkv = params["wqkv"], params["bqkv"][0]
    Q = q @ wqkv[:, :E] + bqkv[:E]
    K = k @ wqkv[:, E:2 * E] + bqkv[E:2 * E]
    V = v @ wqkv[:, 2 * E:] + bqkv[2 * E:]

    def split(x):  # (B,S,E) -> (B,H,S,hd)
        return x.reshape(B, S, num_heads, hd).transpose(0, 2, 1, 3)

    Qh, Kh, Vh = split(Q), split(K), split(V)
    s = jnp.einsum("bhqd,bhkd->bhqk", Qh, Kh) / math.sqrt(hd)
    p = jax.nn.softmax(s, axis=-1)
    attn = jnp.einsum("bhqk,bhkd->bhqd", p, Vh).transpose(0, 2, 1, 3).reshape(B, S, E)
    attn = attn @ params["wo"] + params["bo"][0]

    def ln(x, g, b):
        mu = jnp.mean(x, -1, keepdims=True)
        var = jnp.mean((x - mu) ** 2, -1, keepdims=True)
        return (x - mu) * jax.lax.rsqrt(var + eps) * g[0] + b[0]

    x = ln(q + attn, params["g1"], params["be1"])
    ffn = jnp.maximum(x @ params["w1"] + params["b1"][0], 0.0) @ params["w2"] + params["b2"][0]
    return ln(x + ffn, params["g2"], params["be2"])


# --------------------------------- main --------------------------------------

if __name__ == "__main__":
    B, S, E, H = 2, 8, 32, 4           # batch, seq, embed_dim, num_heads
    HID = 4 * E
    # NOTE: real deployments should use E (and hd) that are multiples of 128
    # for lane-dense vregs / unmasked stores; test shapes follow the module.

    key = jax.random.PRNGKey(0)
    keys = jax.random.split(key, 16)

    def init(k, shape, scale=0.1):
        return (scale * jax.random.normal(k, shape)).astype(jnp.float32)

    params = {
        # attention in-projection: already transposed so y = x @ W + b
        "wqkv": init(keys[0], (E, 3 * E)),
        "bqkv": init(keys[1], (1, 3 * E)),
        "wo":   init(keys[2], (E, E)),
        "bo":   init(keys[3], (1, E)),
        # LayerNorm 1
        "g1":  (1.0 + init(keys[4], (1, E))).astype(jnp.float32),
        "be1": init(keys[5], (1, E)),
        # FFN
        "w1": init(keys[6], (E, HID)),
        "b1": init(keys[7], (1, HID)),
        "w2": init(keys[8], (HID, E)),
        "b2": init(keys[9], (1, E)),
        # LayerNorm 2
        "g2":  (1.0 + init(keys[10], (1, E))).astype(jnp.float32),
        "be2": init(keys[11], (1, E)),
    }

    q = init(keys[12], (B, S, E), scale=1.0)
    k = init(keys[13], (B, S, E), scale=1.0)
    v = init(keys[14], (B, S, E), scale=1.0)

    prep = prepare_params(params, num_heads=H)          # one-time weight prep
    layer = jax.jit(functools.partial(encoder_layer, num_heads=H))

    out = layer(q, k, v, prep)
    out = jax.block_until_ready(out)

    ref = encoder_layer_ref(q, k, v, params, num_heads=H)
    assert out.shape == (B, S, E)
    # bf16 MXU operands + approx reciprocal -> relaxed tolerance vs f32 reference
    assert jnp.allclose(out, ref, atol=3e-2, rtol=3e-2), "mismatch vs JAX reference"

    print("KERNEL_OK")
</pallas_src>

<mosaic_0001>
module attributes {stable_mosaic.version = 11 : i64} {
  func.func @encoder_layer_kernel(%arg0: i32, %arg1: memref<1x8x32xf32, #tpu.memory_space<vmem>>, %arg2: memref<1x8x32xbf16, #tpu.memory_space<vmem>>, %arg3: memref<1x8x32xbf16, #tpu.memory_space<vmem>>, %arg4: memref<32x32xbf16, #tpu.memory_space<vmem>>, %arg5: memref<32x32xbf16, #tpu.memory_space<vmem>>, %arg6: memref<32x32xbf16, #tpu.memory_space<vmem>>, %arg7: memref<1x32xf32, #tpu.memory_space<vmem>>, %arg8: memref<1x32xf32, #tpu.memory_space<vmem>>, %arg9: memref<1x32xf32, #tpu.memory_space<vmem>>, %arg10: memref<32x32xbf16, #tpu.memory_space<vmem>>, %arg11: memref<1x32xf32, #tpu.memory_space<vmem>>, %arg12: memref<1x32xf32, #tpu.memory_space<vmem>>, %arg13: memref<1x32xf32, #tpu.memory_space<vmem>>, %arg14: memref<32x128xbf16, #tpu.memory_space<vmem>>, %arg15: memref<1x128xf32, #tpu.memory_space<vmem>>, %arg16: memref<128x32xbf16, #tpu.memory_space<vmem>>, %arg17: memref<1x32xf32, #tpu.memory_space<vmem>>, %arg18: memref<1x32xf32, #tpu.memory_space<vmem>>, %arg19: memref<1x32xf32, #tpu.memory_space<vmem>>, %arg20: memref<1x8x32xf32, #tpu.memory_space<vmem>>) attributes {dimension_semantics = [#tpu.dimension_semantics<parallel>], iteration_bounds = array<i64: 2>, scalar_prefetch = 0 : i64, scratch_operands = 0 : i64, tpu.core_type = #tpu.core_type<tc>, window_params = [{transform_indices = @transform_0, window_bounds = array<i64: 1, 8, 32>}, {transform_indices = @transform_1, window_bounds = array<i64: 1, 8, 32>}, {transform_indices = @transform_2, window_bounds = array<i64: 1, 8, 32>}, {pipeline_mode = #tpu.pipeline_mode<synchronous>, transform_indices = @transform_3, window_bounds = array<i64: 32, 32>}, {pipeline_mode = #tpu.pipeline_mode<synchronous>, transform_indices = @transform_4, window_bounds = array<i64: 32, 32>}, {pipeline_mode = #tpu.pipeline_mode<synchronous>, transform_indices = @transform_5, window_bounds = array<i64: 32, 32>}, {pipeline_mode = #tpu.pipeline_mode<synchronous>, transform_indices = @transform_6, window_bounds = array<i64: 1, 32>}, {pipeline_mode = #tpu.pipeline_mode<synchronous>, transform_indices = @transform_7, window_bounds = array<i64: 1, 32>}, {pipeline_mode = #tpu.pipeline_mode<synchronous>, transform_indices = @transform_8, window_bounds = array<i64: 1, 32>}, {pipeline_mode = #tpu.pipeline_mode<synchronous>, transform_indices = @transform_9, window_bounds = array<i64: 32, 32>}, {pipeline_mode = #tpu.pipeline_mode<synchronous>, transform_indices = @transform_10, window_bounds = array<i64: 1, 32>}, {pipeline_mode = #tpu.pipeline_mode<synchronous>, transform_indices = @transform_11, window_bounds = array<i64: 1, 32>}, {pipeline_mode = #tpu.pipeline_mode<synchronous>, transform_indices = @transform_12, window_bounds = array<i64: 1, 32>}, {pipeline_mode = #tpu.pipeline_mode<synchronous>, transform_indices = @transform_13, window_bounds = array<i64: 32, 128>}, {pipeline_mode = #tpu.pipeline_mode<synchronous>, transform_indices = @transform_14, window_bounds = array<i64: 1, 128>}, {pipeline_mode = #tpu.pipeline_mode<synchronous>, transform_indices = @transform_15, window_bounds = array<i64: 128, 32>}, {pipeline_mode = #tpu.pipeline_mode<synchronous>, transform_indices = @transform_16, window_bounds = array<i64: 1, 32>}, {pipeline_mode = #tpu.pipeline_mode<synchronous>, transform_indices = @transform_17, window_bounds = array<i64: 1, 32>}, {pipeline_mode = #tpu.pipeline_mode<synchronous>, transform_indices = @transform_18, window_bounds = array<i64: 1, 32>}, {transform_indices = @transform_19, window_bounds = array<i64: 1, 8, 32>}]} {
    %c0 = arith.constant 0 : index
    %c0_0 = arith.constant 0 : index
    %c0_1 = arith.constant 0 : index
    %0 = vector.load %arg1[%c0, %c0_0, %c0_1] : memref<1x8x32xf32, #tpu.memory_space<vmem>>, vector<1x8x32xf32>
    %1 = vector.shape_cast %0 : vector<1x8x32xf32> to vector<8x32xf32>
    %2 = arith.truncf %1 : vector<8x32xf32> to vector<8x32xbf16>
    %c0_2 = arith.constant 0 : index
    %c0_3 = arith.constant 0 : index
    %3 = vector.load %arg4[%c0_2, %c0_3] : memref<32x32xbf16, #tpu.memory_space<vmem>>, vector<32x32xbf16>
    %cst = arith.constant dense<0.000000e+00> : vector<8x32xf32>
    %4 = tpu.matmul %2, %3, %cst {dimension_numbers = #tpu.dot_dimension_numbers<[1], [0], [0], [1], [0, 0, 1, 1], [], []>} : vector<8x32xbf16>, vector<32x32xbf16>, vector<8x32xf32> -> vector<8x32xf32>
    %c0_4 = arith.constant 0 : index
    %c0_5 = arith.constant 0 : index
    %5 = vector.load %arg7[%c0_4, %c0_5] : memref<1x32xf32, #tpu.memory_space<vmem>>, vector<1x32xf32>
    %6 = vector.shape_cast %5 : vector<1x32xf32> to vector<32xf32>
    %7 = vector.shape_cast %6 : vector<32xf32> to vector<1x32xf32>
    %8 = vector.broadcast %7 : vector<1x32xf32> to vector<8x32xf32>
    %9 = arith.addf %4, %8 : vector<8x32xf32>
    %c0_6 = arith.constant 0 : index
    %c0_7 = arith.constant 0 : index
    %c0_8 = arith.constant 0 : index
    %10 = vector.load %arg2[%c0_6, %c0_7, %c0_8] : memref<1x8x32xbf16, #tpu.memory_space<vmem>>, vector<1x8x32xbf16>
    %11 = vector.shape_cast %10 : vector<1x8x32xbf16> to vector<8x32xbf16>
    %c0_9 = arith.constant 0 : index
    %c0_10 = arith.constant 0 : index
    %12 = vector.load %arg5[%c0_9, %c0_10] : memref<32x32xbf16, #tpu.memory_space<vmem>>, vector<32x32xbf16>
    %cst_11 = arith.constant dense<0.000000e+00> : vector<8x32xf32>
    %13 = tpu.matmul %11, %12, %cst_11 {dimension_numbers = #tpu.dot_dimension_numbers<[1], [0], [0], [1], [0, 0, 1, 1], [], []>} : vector<8x32xbf16>, vector<32x32xbf16>, vector<8x32xf32> -> vector<8x32xf32>
    %c0_12 = arith.constant 0 : index
    %c0_13 = arith.constant 0 : index
    %14 = vector.load %arg8[%c0_12, %c0_13] : memref<1x32xf32, #tpu.memory_space<vmem>>, vector<1x32xf32>
    %15 = vector.shape_cast %14 : vector<1x32xf32> to vector<32xf32>
    %16 = vector.shape_cast %15 : vector<32xf32> to vector<1x32xf32>
    %17 = vector.broadcast %16 : vector<1x32xf32> to vector<8x32xf32>
    %18 = arith.addf %13, %17 : vector<8x32xf32>
    %c0_14 = arith.constant 0 : index
    %c0_15 = arith.constant 0 : index
    %c0_16 = arith.constant 0 : index
    %19 = vector.load %arg3[%c0_14, %c0_15, %c0_16] : memref<1x8x32xbf16, #tpu.memory_space<vmem>>, vector<1x8x32xbf16>
    %20 = vector.shape_cast %19 : vector<1x8x32xbf16> to vector<8x32xbf16>
    %c0_17 = arith.constant 0 : index
    %c0_18 = arith.constant 0 : index
    %21 = vector.load %arg6[%c0_17, %c0_18] : memref<32x32xbf16, #tpu.memory_space<vmem>>, vector<32x32xbf16>
    %cst_19 = arith.constant dense<0.000000e+00> : vector<8x32xf32>
    %22 = tpu.matmul %20, %21, %cst_19 {dimension_numbers = #tpu.dot_dimension_numbers<[1], [0], [0], [1], [0, 0, 1, 1], [], []>} : vector<8x32xbf16>, vector<32x32xbf16>, vector<8x32xf32> -> vector<8x32xf32>
    %c0_20 = arith.constant 0 : index
    %c0_21 = arith.constant 0 : index
    %23 = vector.load %arg9[%c0_20, %c0_21] : memref<1x32xf32, #tpu.memory_space<vmem>>, vector<1x32xf32>
    %24 = vector.shape_cast %23 : vector<1x32xf32> to vector<32xf32>
    %25 = vector.shape_cast %24 : vector<32xf32> to vector<1x32xf32>
    %26 = vector.broadcast %25 : vector<1x32xf32> to vector<8x32xf32>
    %27 = arith.addf %22, %26 : vector<8x32xf32>
    %28 = arith.truncf %9 : vector<8x32xf32> to vector<8x32xbf16>
    %29 = arith.truncf %18 : vector<8x32xf32> to vector<8x32xbf16>
    %30 = arith.truncf %27 : vector<8x32xf32> to vector<8x32xbf16>
    %31 = vector.extract_strided_slice %28 {offsets = [0, 0], sizes = [8, 8], strides = [1, 1]} : vector<8x32xbf16> to vector<8x8xbf16>
    %32 = vector.extract_strided_slice %29 {offsets = [0, 0], sizes = [8, 8], strides = [1, 1]} : vector<8x32xbf16> to vector<8x8xbf16>
    %cst_22 = arith.constant dense<0.000000e+00> : vector<8x8xf32>
    %33 = tpu.matmul %31, %32, %cst_22 {dimension_numbers = #tpu.dot_dimension_numbers<[1], [1], [0], [0], [0, 0, 1, 0], [], []>} : vector<8x8xbf16>, vector<8x8xbf16>, vector<8x8xf32> -> vector<8x8xf32>
    %cst_23 = arith.constant dense<0xFF800000> : vector<8xf32>
    %34 = vector.multi_reduction <maximumf>, %33, %cst_23 [1] : vector<8x8xf32> to vector<8xf32>
    %35 = vector.shape_cast %34 : vector<8xf32> to vector<8x1xf32>
    %36 = vector.broadcast %35 : vector<8x1xf32> to vector<8x8xf32>
    %37 = arith.subf %33, %36 : vector<8x8xf32>
    %38 = math.exp %37 : vector<8x8xf32>
    %cst_24 = arith.constant dense<0.000000e+00> : vector<8xf32>
    %39 = vector.multi_reduction <add>, %38, %cst_24 [1] : vector<8x8xf32> to vector<8xf32>
    %40 = vector.shape_cast %39 : vector<8xf32> to vector<8x1xf32>
    %41 = tpu.reciprocal %40 {approx = true} : vector<8x1xf32> -> vector<8x1xf32>
    %42 = vector.broadcast %41 : vector<8x1xf32> to vector<8x8xf32>
    %43 = arith.mulf %38, %42 : vector<8x8xf32>
    %44 = arith.truncf %43 : vector<8x8xf32> to vector<8x8xbf16>
    %45 = vector.extract_strided_slice %30 {offsets = [0, 0], sizes = [8, 8], strides = [1, 1]} : vector<8x32xbf16> to vector<8x8xbf16>
    %cst_25 = arith.constant dense<0.000000e+00> : vector<8x8xf32>
    %46 = tpu.matmul %44, %45, %cst_25 {dimension_numbers = #tpu.dot_dimension_numbers<[1], [0], [0], [1], [0, 0, 1, 1], [], []>} : vector<8x8xbf16>, vector<8x8xbf16>, vector<8x8xf32> -> vector<8x8xf32>
    %47 = vector.extract_strided_slice %28 {offsets = [0, 8], sizes = [8, 8], strides = [1, 1]} : vector<8x32xbf16> to vector<8x8xbf16>
    %48 = vector.extract_strided_slice %29 {offsets = [0, 8], sizes = [8, 8], strides = [1, 1]} : vector<8x32xbf16> to vector<8x8xbf16>
    %cst_26 = arith.constant dense<0.000000e+00> : vector<8x8xf32>
    %49 = tpu.matmul %47, %48, %cst_26 {dimension_numbers = #tpu.dot_dimension_numbers<[1], [1], [0], [0], [0, 0, 1, 0], [], []>} : vector<8x8xbf16>, vector<8x8xbf16>, vector<8x8xf32> -> vector<8x8xf32>
    %cst_27 = arith.constant dense<0xFF800000> : vector<8xf32>
    %50 = vector.multi_reduction <maximumf>, %49, %cst_27 [1] : vector<8x8xf32> to vector<8xf32>
    %51 = vector.shape_cast %50 : vector<8xf32> to vector<8x1xf32>
    %52 = vector.broadcast %51 : vector<8x1xf32> to vector<8x8xf32>
    %53 = arith.subf %49, %52 : vector<8x8xf32>
    %54 = math.exp %53 : vector<8x8xf32>
    %cst_28 = arith.constant dense<0.000000e+00> : vector<8xf32>
    %55 = vector.multi_reduction <add>, %54, %cst_28 [1] : vector<8x8xf32> to vector<8xf32>
    %56 = vector.shape_cast %55 : vector<8xf32> to vector<8x1xf32>
    %57 = tpu.reciprocal %56 {approx = true} : vector<8x1xf32> -> vector<8x1xf32>
    %58 = vector.broadcast %57 : vector<8x1xf32> to vector<8x8xf32>
    %59 = arith.mulf %54, %58 : vector<8x8xf32>
    %60 = arith.truncf %59 : vector<8x8xf32> to vector<8x8xbf16>
    %61 = vector.extract_strided_slice %30 {offsets = [0, 8], sizes = [8, 8], strides = [1, 1]} : vector<8x32xbf16> to vector<8x8xbf16>
    %cst_29 = arith.constant dense<0.000000e+00> : vector<8x8xf32>
    %62 = tpu.matmul %60, %61, %cst_29 {dimension_numbers = #tpu.dot_dimension_numbers<[1], [0], [0], [1], [0, 0, 1, 1], [], []>} : vector<8x8xbf16>, vector<8x8xbf16>, vector<8x8xf32> -> vector<8x8xf32>
    %63 = vector.extract_strided_slice %28 {offsets = [0, 16], sizes = [8, 8], strides = [1, 1]} : vector<8x32xbf16> to vector<8x8xbf16>
    %64 = vector.extract_strided_slice %29 {offsets = [0, 16], sizes = [8, 8], strides = [1, 1]} : vector<8x32xbf16> to vector<8x8xbf16>
    %cst_30 = arith.constant dense<0.000000e+00> : vector<8x8xf32>
    %65 = tpu.matmul %63, %64, %cst_30 {dimension_numbers = #tpu.dot_dimension_numbers<[1], [1], [0], [0], [0, 0, 1, 0], [], []>} : vector<8x8xbf16>, vector<8x8xbf16>, vector<8x8xf32> -> vector<8x8xf32>
    %cst_31 = arith.constant dense<0xFF800000> : vector<8xf32>
    %66 = vector.multi_reduction <maximumf>, %65, %cst_31 [1] : vector<8x8xf32> to vector<8xf32>
    %67 = vector.shape_cast %66 : vector<8xf32> to vector<8x1xf32>
    %68 = vector.broadcast %67 : vector<8x1xf32> to vector<8x8xf32>
    %69 = arith.subf %65, %68 : vector<8x8xf32>
    %70 = math.exp %69 : vector<8x8xf32>
    %cst_32 = arith.constant dense<0.000000e+00> : vector<8xf32>
    %71 = vector.multi_reduction <add>, %70, %cst_32 [1] : vector<8x8xf32> to vector<8xf32>
    %72 = vector.shape_cast %71 : vector<8xf32> to vector<8x1xf32>
    %73 = tpu.reciprocal %72 {approx = true} : vector<8x1xf32> -> vector<8x1xf32>
    %74 = vector.broadcast %73 : vector<8x1xf32> to vector<8x8xf32>
    %75 = arith.mulf %70, %74 : vector<8x8xf32>
    %76 = arith.truncf %75 : vector<8x8xf32> to vector<8x8xbf16>
    %77 = vector.extract_strided_slice %30 {offsets = [0, 16], sizes = [8, 8], strides = [1, 1]} : vector<8x32xbf16> to vector<8x8xbf16>
    %cst_33 = arith.constant dense<0.000000e+00> : vector<8x8xf32>
    %78 = tpu.matmul %76, %77, %cst_33 {dimension_numbers = #tpu.dot_dimension_numbers<[1], [0], [0], [1], [0, 0, 1, 1], [], []>} : vector<8x8xbf16>, vector<8x8xbf16>, vector<8x8xf32> -> vector<8x8xf32>
    %79 = vector.extract_strided_slice %28 {offsets = [0, 24], sizes = [8, 8], strides = [1, 1]} : vector<8x32xbf16> to vector<8x8xbf16>
    %80 = vector.extract_strided_slice %29 {offsets = [0, 24], sizes = [8, 8], strides = [1, 1]} : vector<8x32xbf16> to vector<8x8xbf16>
    %cst_34 = arith.constant dense<0.000000e+00> : vector<8x8xf32>
    %81 = tpu.matmul %79, %80, %cst_34 {dimension_numbers = #tpu.dot_dimension_numbers<[1], [1], [0], [0], [0, 0, 1, 0], [], []>} : vector<8x8xbf16>, vector<8x8xbf16>, vector<8x8xf32> -> vector<8x8xf32>
    %cst_35 = arith.constant dense<0xFF800000> : vector<8xf32>
    %82 = vector.multi_reduction <maximumf>, %81, %cst_35 [1] : vector<8x8xf32> to vector<8xf32>
    %83 = vector.shape_cast %82 : vector<8xf32> to vector<8x1xf32>
    %84 = vector.broadcast %83 : vector<8x1xf32> to vector<8x8xf32>
    %85 = arith.subf %81, %84 : vector<8x8xf32>
    %86 = math.exp %85 : vector<8x8xf32>
    %cst_36 = arith.constant dense<0.000000e+00> : vector<8xf32>
    %87 = vector.multi_reduction <add>, %86, %cst_36 [1] : vector<8x8xf32> to vector<8xf32>
    %88 = vector.shape_cast %87 : vector<8xf32> to vector<8x1xf32>
    %89 = tpu.reciprocal %88 {approx = true} : vector<8x1xf32> -> vector<8x1xf32>
    %90 = vector.broadcast %89 : vector<8x1xf32> to vector<8x8xf32>
    %91 = arith.mulf %86, %90 : vector<8x8xf32>
    %92 = arith.truncf %91 : vector<8x8xf32> to vector<8x8xbf16>
    %93 = vector.extract_strided_slice %30 {offsets = [0, 24], sizes = [8, 8], strides = [1, 1]} : vector<8x32xbf16> to vector<8x8xbf16>
    %cst_37 = arith.constant dense<0.000000e+00> : vector<8x8xf32>
    %94 = tpu.matmul %92, %93, %cst_37 {dimension_numbers = #tpu.dot_dimension_numbers<[1], [0], [0], [1], [0, 0, 1, 1], [], []>} : vector<8x8xbf16>, vector<8x8xbf16>, vector<8x8xf32> -> vector<8x8xf32>
    %95 = tpu.concatenate %46, %62, %78, %94 in 1 : vector<8x8xf32>, vector<8x8xf32>, vector<8x8xf32>, vector<8x8xf32> -> vector<8x32xf32>
    %96 = arith.truncf %95 : vector<8x32xf32> to vector<8x32xbf16>
    %c0_38 = arith.constant 0 : index
    %c0_39 = arith.constant 0 : index
    %97 = vector.load %arg10[%c0_38, %c0_39] : memref<32x32xbf16, #tpu.memory_space<vmem>>, vector<32x32xbf16>
    %cst_40 = arith.constant dense<0.000000e+00> : vector<8x32xf32>
    %98 = tpu.matmul %96, %97, %cst_40 {dimension_numbers = #tpu.dot_dimension_numbers<[1], [0], [0], [1], [0, 0, 1, 1], [], []>} : vector<8x32xbf16>, vector<32x32xbf16>, vector<8x32xf32> -> vector<8x32xf32>
    %c0_41 = arith.constant 0 : index
    %c0_42 = arith.constant 0 : index
    %99 = vector.load %arg11[%c0_41, %c0_42] : memref<1x32xf32, #tpu.memory_space<vmem>>, vector<1x32xf32>
    %100 = vector.shape_cast %99 : vector<1x32xf32> to vector<32xf32>
    %101 = vector.shape_cast %100 : vector<32xf32> to vector<1x32xf32>
    %102 = vector.broadcast %101 : vector<1x32xf32> to vector<8x32xf32>
    %103 = arith.addf %98, %102 : vector<8x32xf32>
    %104 = arith.addf %1, %103 : vector<8x32xf32>
    %cst_43 = arith.constant dense<0.000000e+00> : vector<8xf32>
    %105 = vector.multi_reduction <add>, %104, %cst_43 [1] : vector<8x32xf32> to vector<8xf32>
    %106 = vector.shape_cast %105 : vector<8xf32> to vector<8x1xf32>
    %cst_44 = arith.constant 3.200000e+01 : f32
    %107 = vector.broadcast %cst_44 : f32 to vector<8x1xf32>
    %108 = arith.divf %106, %107 : vector<8x1xf32>
    %109 = vector.broadcast %108 : vector<8x1xf32> to vector<8x32xf32>
    %110 = arith.subf %104, %109 : vector<8x32xf32>
    %111 = arith.mulf %110, %110 : vector<8x32xf32>
    %cst_45 = arith.constant dense<0.000000e+00> : vector<8xf32>
    %112 = vector.multi_reduction <add>, %111, %cst_45 [1] : vector<8x32xf32> to vector<8xf32>
    %113 = vector.shape_cast %112 : vector<8xf32> to vector<8x1xf32>
    %cst_46 = arith.constant 3.200000e+01 : f32
    %114 = vector.broadcast %cst_46 : f32 to vector<8x1xf32>
    %115 = arith.divf %113, %114 : vector<8x1xf32>
    %116 = vector.broadcast %108 : vector<8x1xf32> to vector<8x32xf32>
    %117 = arith.subf %104, %116 : vector<8x32xf32>
    %cst_47 = arith.constant 9.99999974E-6 : f32
    %118 = vector.broadcast %cst_47 : f32 to vector<8x1xf32>
    %119 = arith.addf %115, %118 : vector<8x1xf32>
    %120 = math.rsqrt %119 : vector<8x1xf32>
    %121 = vector.broadcast %120 : vector<8x1xf32> to vector<8x32xf32>
    %122 = arith.mulf %117, %121 : vector<8x32xf32>
    %c0_48 = arith.constant 0 : index
    %c0_49 = arith.constant 0 : index
    %123 = vector.load %arg12[%c0_48, %c0_49] : memref<1x32xf32, #tpu.memory_space<vmem>>, vector<1x32xf32>
    %124 = vector.shape_cast %123 : vector<1x32xf32> to vector<32xf32>
    %125 = vector.shape_cast %124 : vector<32xf32> to vector<1x32xf32>
    %126 = vector.broadcast %125 : vector<1x32xf32> to vector<8x32xf32>
    %127 = arith.mulf %122, %126 : vector<8x32xf32>
    %c0_50 = arith.constant 0 : index
    %c0_51 = arith.constant 0 : index
    %128 = vector.load %arg13[%c0_50, %c0_51] : memref<1x32xf32, #tpu.memory_space<vmem>>, vector<1x32xf32>
    %129 = vector.shape_cast %128 : vector<1x32xf32> to vector<32xf32>
    %130 = vector.shape_cast %129 : vector<32xf32> to vector<1x32xf32>
    %131 = vector.broadcast %130 : vector<1x32xf32> to vector<8x32xf32>
    %132 = arith.addf %127, %131 : vector<8x32xf32>
    %133 = arith.truncf %132 : vector<8x32xf32> to vector<8x32xbf16>
    %c0_52 = arith.constant 0 : index
    %c0_53 = arith.constant 0 : index
    %134 = vector.load %arg14[%c0_52, %c0_53] : memref<32x128xbf16, #tpu.memory_space<vmem>>, vector<32x128xbf16>
    %cst_54 = arith.constant dense<0.000000e+00> : vector<8x128xf32>
    %135 = tpu.matmul %133, %134, %cst_54 {dimension_numbers = #tpu.dot_dimension_numbers<[1], [0], [0], [1], [0, 0, 1, 1], [], []>} : vector<8x32xbf16>, vector<32x128xbf16>, vector<8x128xf32> -> vector<8x128xf32>
    %c0_55 = arith.constant 0 : index
    %c0_56 = arith.constant 0 : index
    %136 = vector.load %arg15[%c0_55, %c0_56] : memref<1x128xf32, #tpu.memory_space<vmem>>, vector<1x128xf32>
    %137 = vector.shape_cast %136 : vector<1x128xf32> to vector<128xf32>
    %138 = vector.shape_cast %137 : vector<128xf32> to vector<1x128xf32>
    %139 = vector.broadcast %138 : vector<1x128xf32> to vector<8x128xf32>
    %140 = arith.addf %135, %139 : vector<8x128xf32>
    %cst_57 = arith.constant 0.000000e+00 : f32
    %141 = vector.broadcast %cst_57 : f32 to vector<8x128xf32>
    %142 = arith.maximumf %140, %141 : vector<8x128xf32>
    %143 = arith.truncf %142 : vector<8x128xf32> to vector<8x128xbf16>
    %c0_58 = arith.constant 0 : index
    %c0_59 = arith.constant 0 : index
    %144 = vector.load %arg16[%c0_58, %c0_59] : memref<128x32xbf16, #tpu.memory_space<vmem>>, vector<128x32xbf16>
    %cst_60 = arith.constant dense<0.000000e+00> : vector<8x32xf32>
    %145 = tpu.matmul %143, %144, %cst_60 {dimension_numbers = #tpu.dot_dimension_numbers<[1], [0], [0], [1], [0, 0, 1, 1], [], []>} : vector<8x128xbf16>, vector<128x32xbf16>, vector<8x32xf32> -> vector<8x32xf32>
    %c0_61 = arith.constant 0 : index
    %c0_62 = arith.constant 0 : index
    %146 = vector.load %arg17[%c0_61, %c0_62] : memref<1x32xf32, #tpu.memory_space<vmem>>, vector<1x32xf32>
    %147 = vector.shape_cast %146 : vector<1x32xf32> to vector<32xf32>
    %148 = vector.shape_cast %147 : vector<32xf32> to vector<1x32xf32>
    %149 = vector.broadcast %148 : vector<1x32xf32> to vector<8x32xf32>
    %150 = arith.addf %145, %149 : vector<8x32xf32>
    %151 = arith.addf %132, %150 : vector<8x32xf32>
    %cst_63 = arith.constant dense<0.000000e+00> : vector<8xf32>
    %152 = vector.multi_reduction <add>, %151, %cst_63 [1] : vector<8x32xf32> to vector<8xf32>
    %153 = vector.shape_cast %152 : vector<8xf32> to vector<8x1xf32>
    %cst_64 = arith.constant 3.200000e+01 : f32
    %154 = vector.broadcast %cst_64 : f32 to vector<8x1xf32>
    %155 = arith.divf %153, %154 : vector<8x1xf32>
    %156 = vector.broadcast %155 : vector<8x1xf32> to vector<8x32xf32>
    %157 = arith.subf %151, %156 : vector<8x32xf32>
    %158 = arith.mulf %157, %157 : vector<8x32xf32>
    %cst_65 = arith.constant dense<0.000000e+00> : vector<8xf32>
    %159 = vector.multi_reduction <add>, %158, %cst_65 [1] : vector<8x32xf32> to vector<8xf32>
    %160 = vector.shape_cast %159 : vector<8xf32> to vector<8x1xf32>
    %cst_66 = arith.constant 3.200000e+01 : f32
    %161 = vector.broadcast %cst_66 : f32 to vector<8x1xf32>
    %162 = arith.divf %160, %161 : vector<8x1xf32>
    %163 = vector.broadcast %155 : vector<8x1xf32> to vector<8x32xf32>
    %164 = arith.subf %151, %163 : vector<8x32xf32>
    %cst_67 = arith.constant 9.99999974E-6 : f32
    %165 = vector.broadcast %cst_67 : f32 to vector<8x1xf32>
    %166 = arith.addf %162, %165 : vector<8x1xf32>
    %167 = math.rsqrt %166 : vector<8x1xf32>
    %168 = vector.broadcast %167 : vector<8x1xf32> to vector<8x32xf32>
    %169 = arith.mulf %164, %168 : vector<8x32xf32>
    %c0_68 = arith.constant 0 : index
    %c0_69 = arith.constant 0 : index
    %170 = vector.load %arg18[%c0_68, %c0_69] : memref<1x32xf32, #tpu.memory_space<vmem>>, vector<1x32xf32>
    %171 = vector.shape_cast %170 : vector<1x32xf32> to vector<32xf32>
    %172 = vector.shape_cast %171 : vector<32xf32> to vector<1x32xf32>
    %173 = vector.broadcast %172 : vector<1x32xf32> to vector<8x32xf32>
    %174 = arith.mulf %169, %173 : vector<8x32xf32>
    %c0_70 = arith.constant 0 : index
    %c0_71 = arith.constant 0 : index
    %175 = vector.load %arg19[%c0_70, %c0_71] : memref<1x32xf32, #tpu.memory_space<vmem>>, vector<1x32xf32>
    %176 = vector.shape_cast %175 : vector<1x32xf32> to vector<32xf32>
    %177 = vector.shape_cast %176 : vector<32xf32> to vector<1x32xf32>
    %178 = vector.broadcast %177 : vector<1x32xf32> to vector<8x32xf32>
    %179 = arith.addf %174, %178 : vector<8x32xf32>
    %c0_72 = arith.constant 0 : index
    %c0_73 = arith.constant 0 : index
    %c0_74 = arith.constant 0 : index
    %180 = vector.load %arg20[%c0_72, %c0_73, %c0_74] : memref<1x8x32xf32, #tpu.memory_space<vmem>>, vector<1x8x32xf32>
    %181 = vector.shape_cast %180 : vector<1x8x32xf32> to vector<8x32xf32>
    %182 = vector.shape_cast %179 : vector<8x32xf32> to vector<1x8x32xf32>
    tpu.vector_store %arg20[%c0_72, %c0_73, %c0_74], %182 {strides = array<i32>} : memref<1x8x32xf32, #tpu.memory_space<vmem>>, vector<1x8x32xf32>,
    return
  }
  func.func @transform_0(%arg0: i32) -> (i32, i32, i32) {
    %c0_i32 = arith.constant 0 : i32
    %c0_i32_0 = arith.constant 0 : i32
    %c0_i32_1 = arith.constant 0 : i32
    return %arg0, %c0_i32, %c0_i32_0 : i32, i32, i32
  }
  func.func @transform_1(%arg0: i32) -> (i32, i32, i32) {
    %c0_i32 = arith.constant 0 : i32
    %c0_i32_0 = arith.constant 0 : i32
    %c0_i32_1 = arith.constant 0 : i32
    return %arg0, %c0_i32, %c0_i32_0 : i32, i32, i32
  }
  func.func @transform_2(%arg0: i32) -> (i32, i32, i32) {
    %c0_i32 = arith.constant 0 : i32
    %c0_i32_0 = arith.constant 0 : i32
    %c0_i32_1 = arith.constant 0 : i32
    return %arg0, %c0_i32, %c0_i32_0 : i32, i32, i32
  }
  func.func @transform_3(%arg0: i32) -> (i32, i32) {
    %c0_i32 = arith.constant 0 : i32
    %c0_i32_0 = arith.constant 0 : i32
    %c0_i32_1 = arith.constant 0 : i32
    return %c0_i32, %c0_i32_0 : i32, i32
  }
  func.func @transform_4(%arg0: i32) -> (i32, i32) {
    %c0_i32 = arith.constant 0 : i32
    %c0_i32_0 = arith.constant 0 : i32
    %c0_i32_1 = arith.constant 0 : i32
    return %c0_i32, %c0_i32_0 : i32, i32
  }
  func.func @transform_5(%arg0: i32) -> (i32, i32) {
    %c0_i32 = arith.constant 0 : i32
    %c0_i32_0 = arith.constant 0 : i32
    %c0_i32_1 = arith.constant 0 : i32
    return %c0_i32, %c0_i32_0 : i32, i32
  }
  func.func @transform_6(%arg0: i32) -> (i32, i32) {
    %c0_i32 = arith.constant 0 : i32
    %c0_i32_0 = arith.constant 0 : i32
    %c0_i32_1 = arith.constant 0 : i32
    return %c0_i32, %c0_i32_0 : i32, i32
  }
  func.func @transform_7(%arg0: i32) -> (i32, i32) {
    %c0_i32 = arith.constant 0 : i32
    %c0_i32_0 = arith.constant 0 : i32
    %c0_i32_1 = arith.constant 0 : i32
    return %c0_i32, %c0_i32_0 : i32, i32
  }
  func.func @transform_8(%arg0: i32) -> (i32, i32) {
    %c0_i32 = arith.constant 0 : i32
    %c0_i32_0 = arith.constant 0 : i32
    %c0_i32_1 = arith.constant 0 : i32
    return %c0_i32, %c0_i32_0 : i32, i32
  }
  func.func @transform_9(%arg0: i32) -> (i32, i32) {
    %c0_i32 = arith.constant 0 : i32
    %c0_i32_0 = arith.constant 0 : i32
    %c0_i32_1 = arith.constant 0 : i32
    return %c0_i32, %c0_i32_0 : i32, i32
  }
  func.func @transform_10(%arg0: i32) -> (i32, i32) {
    %c0_i32 = arith.constant 0 : i32
    %c0_i32_0 = arith.constant 0 : i32
    %c0_i32_1 = arith.constant 0 : i32
    return %c0_i32, %c0_i32_0 : i32, i32
  }
  func.func @transform_11(%arg0: i32) -> (i32, i32) {
    %c0_i32 = arith.constant 0 : i32
    %c0_i32_0 = arith.constant 0 : i32
    %c0_i32_1 = arith.constant 0 : i32
    return %c0_i32, %c0_i32_0 : i32, i32
  }
  func.func @transform_12(%arg0: i32) -> (i32, i32) {
    %c0_i32 = arith.constant 0 : i32
    %c0_i32_0 = arith.constant 0 : i32
    %c0_i32_1 = arith.constant 0 : i32
    return %c0_i32, %c0_i32_0 : i32, i32
  }
  func.func @transform_13(%arg0: i32) -> (i32, i32) {
    %c0_i32 = arith.constant 0 : i32
    %c0_i32_0 = arith.constant 0 : i32
    %c0_i32_1 = arith.constant 0 : i32
    return %c0_i32, %c0_i32_0 : i32, i32
  }
  func.func @transform_14(%arg0: i32) -> (i32, i32) {
    %c0_i32 = arith.constant 0 : i32
    %c0_i32_0 = arith.constant 0 : i32
    %c0_i32_1 = arith.constant 0 : i32
    return %c0_i32, %c0_i32_0 : i32, i32
  }
  func.func @transform_15(%arg0: i32) -> (i32, i32) {
    %c0_i32 = arith.constant 0 : i32
    %c0_i32_0 = arith.constant 0 : i32
    %c0_i32_1 = arith.constant 0 : i32
    return %c0_i32, %c0_i32_0 : i32, i32
  }
  func.func @transform_16(%arg0: i32) -> (i32, i32) {
    %c0_i32 = arith.constant 0 : i32
    %c0_i32_0 = arith.constant 0 : i32
    %c0_i32_1 = arith.constant 0 : i32
    return %c0_i32, %c0_i32_0 : i32, i32
  }
  func.func @transform_17(%arg0: i32) -> (i32, i32) {
    %c0_i32 = arith.constant 0 : i32
    %c0_i32_0 = arith.constant 0 : i32
    %c0_i32_1 = arith.constant 0 : i32
    return %c0_i32, %c0_i32_0 : i32, i32
  }
  func.func @transform_18(%arg0: i32) -> (i32, i32) {
    %c0_i32 = arith.constant 0 : i32
    %c0_i32_0 = arith.constant 0 : i32
    %c0_i32_1 = arith.constant 0 : i32
    return %c0_i32, %c0_i32_0 : i32, i32
  }
  func.func @transform_19(%arg0: i32) -> (i32, i32, i32) {
    %c0_i32 = arith.constant 0 : i32
    %c0_i32_0 = arith.constant 0 : i32
    %c0_i32_1 = arith.constant 0 : i32
    return %arg0, %c0_i32, %c0_i32_0 : i32, i32, i32
  }
}

</mosaic_0001>

<llo_original>
// kernel: encoder_layer.1
$region0: #{encoder_layer.1}
  #allocation0 [shape = 'u32[]', space=smem, size = 0x4, offset = 0x4, fixed_abs, tag = 'smem constant byte address 0x4 - core index']
  #allocation1 [shape = 'u32[144,128]{1,0:T(1,128)}', space=vmem, size = 0x12000, scoped, tag = 'internal scratch']
  %s0 = inlined_call_operand.vmem [shape: f32[2,8,32], index: 0, kind: input, shape index: {}]
  %s1 = inlined_call_operand.vmem [shape: bf16[2,8,32], index: 1, kind: input, shape index: {}]
  %s2 = inlined_call_operand.vmem [shape: bf16[2,8,32], index: 2, kind: input, shape index: {}]
  %s3 = inlined_call_operand.vmem [shape: bf16[32,32], index: 3, kind: input, shape index: {}]
  %s4 = inlined_call_operand.vmem [shape: bf16[32,32], index: 4, kind: input, shape index: {}]
  %s5 = inlined_call_operand.vmem [shape: bf16[32,32], index: 5, kind: input, shape index: {}]
  %s6 = inlined_call_operand.vmem [shape: f32[1,32], index: 6, kind: input, shape index: {}]
  %s7 = inlined_call_operand.vmem [shape: f32[1,32], index: 7, kind: input, shape index: {}]
  %s8 = inlined_call_operand.vmem [shape: f32[1,32], index: 8, kind: input, shape index: {}]
  %s9 = inlined_call_operand.vmem [shape: bf16[32,32], index: 9, kind: input, shape index: {}]
  %s10 = inlined_call_operand.vmem [shape: f32[1,32], index: 10, kind: input, shape index: {}]
  %s11 = inlined_call_operand.vmem [shape: f32[1,32], index: 11, kind: input, shape index: {}]
  %s12 = inlined_call_operand.vmem [shape: f32[1,32], index: 12, kind: input, shape index: {}]
  %s13 = inlined_call_operand.vmem [shape: bf16[32,128], index: 13, kind: input, shape index: {}]
  %s14 = inlined_call_operand.hbm [shape: f32[1,128], index: 14, kind: input, shape index: {}]
  %s15 = inlined_call_operand.vmem [shape: bf16[128,32], index: 15, kind: input, shape index: {}]
  %s16 = inlined_call_operand.vmem [shape: f32[1,32], index: 16, kind: input, shape index: {}]
  %s17 = inlined_call_operand.vmem [shape: f32[1,32], index: 17, kind: input, shape index: {}]
  %s18 = inlined_call_operand.vmem [shape: f32[1,32], index: 18, kind: input, shape index: {}]
  %s19 = inlined_call_operand.hbm [shape: f32[2,8,32], index: 19, kind: output, shape index: {}]
  %s20 = sld [smem:[#allocation0]]
  $region113: #{encoder_layer.1} parent=0
    _
  %s22 = ssub.s32 1, %s20
  %s23 = scalar_select 0, %s22, %s20
  $region1: #{encoder_layer.1} parent=0
    #allocation2 [shape = 'u8[512]{0}', space=vmem, size = 0x400, scoped, tag = 'input window, operand 14, single buffered']
    #allocation3 [shape = 's32[2]{0}', space=sflag, size = 0x8, scoped, tag = 'scoped memory for encoder_layer.1']
    #allocation4 [shape = 's32[2]{0}', space=sflag, size = 0x8, scoped, tag = 'scoped memory for encoder_layer.1']
    #allocation5 [shape = 'u8[8192]{0}', space=vmem, size = 0x2000, scoped, tag = 'output window, operand 0']
    %24 = vsyncpa [#allocation3], 0
    %25 = vsyncpa [#allocation4], 0
    %s26 = scalar_lea.sflag [#allocation4], 1
    %27 = vsyncpa %s26, 0
    loop: start=0, step=1, limit=4
    $region2: #{encoder_layer.1} parent=1 // loop_pre_header
      _
    $region3: #{encoder_layer.1} parent=1 // loop_header
      %s29 = sphi 0, %s33
      %p30 = scmp.ge.s32.totalorder %s29, 4
      %s39 = sphi 0, %s41
      %s42 = sphi 0, %s39
      %s43 = sphi 0, %s42
      %s59 = sphi 0, %s43
      %s65 = sphi 0, %s67
      %s68 = sphi 0, %s65
      %s69 = sphi 0, %s68
      %s85 = sphi 0, %s69
      %s91 = sphi 0, %s93
      %s94 = sphi 0, %s91
      %s95 = sphi 0, %s94
      %s111 = sphi 0, %s95
      %s115 = sphi 0, %s115
      %s117 = sphi 0, %s115
      %s118 = sphi 0, %s117
      %s132 = sphi 0, %s118
      %s136 = sphi 0, %s136
      %s138 = sphi 0, %s136
      %s139 = sphi 0, %s138
      %s153 = sphi 0, %s139
      %s157 = sphi 0, %s157
      %s159 = sphi 0, %s157
      %s160 = sphi 0, %s159
      %s174 = sphi 0, %s160
      %s178 = sphi 0, %s178
      %s180 = sphi 0, %s178
      %s181 = sphi 0, %s180
      %s195 = sphi 0, %s181
      %s199 = sphi 0, %s199
      %s201 = sphi 0, %s199
      %s202 = sphi 0, %s201
      %s216 = sphi 0, %s202
      %s220 = sphi 0, %s220
      %s222 = sphi 0, %s220
      %s223 = sphi 0, %s222
      %s237 = sphi 0, %s223
      %s241 = sphi 0, %s241
      %s243 = sphi 0, %s241
      %s244 = sphi 0, %s243
      %s258 = sphi 0, %s244
      %s262 = sphi 0, %s262
      %s264 = sphi 0, %s262
      %s265 = sphi 0, %s264
      %s279 = sphi 0, %s265
      %s283 = sphi 0, %s283
      %s285 = sphi 0, %s283
      %s286 = sphi 0, %s285
      %s300 = sphi 0, %s286
      %s304 = sphi 0, %s304
      %s306 = sphi 0, %s304
      %s307 = sphi 0, %s306
      %s321 = sphi 0, %s307
      %s325 = sphi 0, %s325
      %s327 = sphi 0, %s325
      %s328 = sphi 0, %s327
      %s342 = sphi 0, %s328
      %s346 = sphi 0, %s346
      %s348 = sphi 0, %s346
      %s349 = sphi 0, %s348
      %s363 = sphi 0, %s349
      %s367 = sphi 0, %s367
      %s369 = sphi 0, %s367
      %s370 = sphi 0, %s369
      %s384 = sphi 0, %s370
      %s388 = sphi 0, %s388
      %s390 = sphi 0, %s388
      %s391 = sphi 0, %s390
      %s405 = sphi 0, %s391
      %s409 = sphi 0, %s409
      %s411 = sphi 0, %s409
      %s412 = sphi 0, %s411
      %s426 = sphi 0, %s412
      %s430 = sphi 0, %s430
      %s432 = sphi 0, %s430
      %s433 = sphi 0, %s432
      %s447 = sphi 0, %s433
      %s453 = sphi 0, %s455
      %s456 = sphi 0, %s453
      %s457 = sphi 0, %s456
      %s473 = sphi 0, %s457
    $region4: #{encoder_layer.1} parent=1 // loop_header_branch
      %32 = sbr.rel (%p30) target = $region8
    $region5: #{encoder_layer.1} parent=1 // loop_body
      %s34 = ssub.s32 %s29, 1
      %s35 = ssub.s32 %s29, 2
      %s36 = sadd.s32 %s29, 1
      %s37 = ssub.s32 %s29, %s36
      %p38 = scmp.eq.s32.totalorder %s37, 0
      %s40 = sadd.s32 %s39, 1
      %s41 = scalar_select %p38, %s39, %s40
      %p44 = pneg %p38
      %p45 = scmp.eq.s32.totalorder %s29, 1
      %p46 = por %p44, %p45
      %p47 = scmp.ne.s32.totalorder %s39, %s42
      %p48 = scmp.eq.s32.totalorder %s29, 0
      %p49 = por %p47, %p48
      %p50 = scmp.ne.s32.totalorder %s39, %s42
      %p51 = scmp.eq.s32.totalorder %s34, 1
      %p52 = por %p50, %p51
      %p53 = scmp.ne.s32.totalorder %s42, %s43
      %p54 = scmp.eq.s32.totalorder %s34, 0
      %p55 = por %p53, %p54
      %p56 = scmp.ne.s32.totalorder %s42, %s43
      %p57 = scmp.eq.s32.totalorder %s35, 1
      %p58 = por %p56, %p57
      %p60 = scmp.ne.s32.totalorder %s43, %s59
      %p61 = scmp.eq.s32.totalorder %s35, 0
      %p62 = por %p60, %p61
      %s63 = ssub.s32 %s29, %s36
      %p64 = scmp.eq.s32.totalorder %s63, 0
      %s66 = sadd.s32 %s65, 1
      %s67 = scalar_select %p64, %s65, %s66
      %p70 = pneg %p64
      %p71 = scmp.eq.s32.totalorder %s29, 1
      %p72 = por %p70, %p71
      %p73 = scmp.ne.s32.totalorder %s65, %s68
      %p74 = scmp.eq.s32.totalorder %s29, 0
      %p75 = por %p73, %p74
      %p76 = scmp.ne.s32.totalorder %s65, %s68
      %p77 = scmp.eq.s32.totalorder %s34, 1
      %p78 = por %p76, %p77
      %p79 = scmp.ne.s32.totalorder %s68, %s69
      %p80 = scmp.eq.s32.totalorder %s34, 0
      %p81 = por %p79, %p80
      %p82 = scmp.ne.s32.totalorder %s68, %s69
      %p83 = scmp.eq.s32.totalorder %s35, 1
      %p84 = por %p82, %p83
      %p86 = scmp.ne.s32.totalorder %s69, %s85
      %p87 = scmp.eq.s32.totalorder %s35, 0
      %p88 = por %p86, %p87
      %s89 = ssub.s32 %s29, %s36
      %p90 = scmp.eq.s32.totalorder %s89, 0
      %s92 = sadd.s32 %s91, 1
      %s93 = scalar_select %p90, %s91, %s92
      %p96 = pneg %p90
      %p97 = scmp.eq.s32.totalorder %s29, 1
      %p98 = por %p96, %p97
      %p99 = scmp.ne.s32.totalorder %s91, %s94
      %p100 = scmp.eq.s32.totalorder %s29, 0
      %p101 = por %p99, %p100
      %p102 = scmp.ne.s32.totalorder %s91, %s94
      %p103 = scmp.eq.s32.totalorder %s34, 1
      %p104 = por %p102, %p103
      %p105 = scmp.ne.s32.totalorder %s94, %s95
      %p106 = scmp.eq.s32.totalorder %s34, 0
      %p107 = por %p105, %p106
      %p108 = scmp.ne.s32.totalorder %s94, %s95
      %p109 = scmp.eq.s32.totalorder %s35, 1
      %p110 = por %p108, %p109
      %p112 = scmp.ne.s32.totalorder %s95, %s111
      %p113 = scmp.eq.s32.totalorder %s35, 0
      %p114 = por %p112, %p113
      %s116 = sadd.s32 %s115, 1
      %p119 = scmp.eq.s32.totalorder %s29, 1
      %p120 = scmp.ne.s32.totalorder %s115, %s117
      %p121 = scmp.eq.s32.totalorder %s29, 0
      %p122 = por %p120, %p121
      %p123 = scmp.ne.s32.totalorder %s115, %s117
      %p124 = scmp.eq.s32.totalorder %s34, 1
      %p125 = por %p123, %p124
      %p126 = scmp.ne.s32.totalorder %s117, %s118
      %p127 = scmp.eq.s32.totalorder %s34, 0
      %p128 = por %p126, %p127
      %p129 = scmp.ne.s32.totalorder %s117, %s118
      %p130 = scmp.eq.s32.totalorder %s35, 1
      %p131 = por %p129, %p130
      %p133 = scmp.ne.s32.totalorder %s118, %s132
      %p134 = scmp.eq.s32.totalorder %s35, 0
      %p135 = por %p133, %p134
      %s137 = sadd.s32 %s136, 1
      %p140 = scmp.eq.s32.totalorder %s29, 1
      %p141 = scmp.ne.s32.totalorder %s136, %s138
      %p142 = scmp.eq.s32.totalorder %s29, 0
      %p143 = por %p141, %p142
      %p144 = scmp.ne.s32.totalorder %s136, %s138
      %p145 = scmp.eq.s32.totalorder %s34, 1
      %p146 = por %p144, %p145
      %p147 = scmp.ne.s32.totalorder %s138, %s139
      %p148 = scmp.eq.s32.totalorder %s34, 0
      %p149 = por %p147, %p148
      %p150 = scmp.ne.s32.totalorder %s138, %s139
      %p151 = scmp.eq.s32.totalorder %s35, 1
      %p152 = por %p150, %p151
      %p154 = scmp.ne.s32.totalorder %s139, %s153
      %p155 = scmp.eq.s32.totalorder %s35, 0
      %p156 = por %p154, %p155
      %s158 = sadd.s32 %s157, 1
      %p161 = scmp.eq.s32.totalorder %s29, 1
      %p162 = scmp.ne.s32.totalorder %s157, %s159
      %p163 = scmp.eq.s32.totalorder %s29, 0
      %p164 = por %p162, %p163
      %p165 = scmp.ne.s32.totalorder %s157, %s159
      %p166 = scmp.eq.s32.totalorder %s34, 1
      %p167 = por %p165, %p166
      %p168 = scmp.ne.s32.totalorder %s159, %s160
      %p169 = scmp.eq.s32.totalorder %s34, 0
      %p170 = por %p168, %p169
      %p171 = scmp.ne.s32.totalorder %s159, %s160
      %p172 = scmp.eq.s32.totalorder %s35, 1
      %p173 = por %p171, %p172
      %p175 = scmp.ne.s32.totalorder %s160, %s174
      %p176 = scmp.eq.s32.totalorder %s35, 0
      %p177 = por %p175, %p176
      %s179 = sadd.s32 %s178, 1
      %p182 = scmp.eq.s32.totalorder %s29, 1
      %p183 = scmp.ne.s32.totalorder %s178, %s180
      %p184 = scmp.eq.s32.totalorder %s29, 0
      %p185 = por %p183, %p184
      %p186 = scmp.ne.s32.totalorder %s178, %s180
      %p187 = scmp.eq.s32.totalorder %s34, 1
      %p188 = por %p186, %p187
      %p189 = scmp.ne.s32.totalorder %s180, %s181
      %p190 = scmp.eq.s32.totalorder %s34, 0
      %p191 = por %p189, %p190
      %p192 = scmp.ne.s32.totalorder %s180, %s181
      %p193 = scmp.eq.s32.totalorder %s35, 1
      %p194 = por %p192, %p193
      %p196 = scmp.ne.s32.totalorder %s181, %s195
      %p197 = scmp.eq.s32.totalorder %s35, 0
      %p198 = por %p196, %p197
      %s200 = sadd.s32 %s199, 1
      %p203 = scmp.eq.s32.totalorder %s29, 1
      %p204 = scmp.ne.s32.totalorder %s199, %s201
      %p205 = scmp.eq.s32.totalorder %s29, 0
      %p206 = por %p204, %p205
      %p207 = scmp.ne.s32.totalorder %s199, %s201
      %p208 = scmp.eq.s32.totalorder %s34, 1
      %p209 = por %p207, %p208
      %p210 = scmp.ne.s32.totalorder %s201, %s202
      %p211 = scmp.eq.s32.totalorder %s34, 0
      %p212 = por %p210, %p211
      %p213 = scmp.ne.s32.totalorder %s201, %s202
      %p214 = scmp.eq.s32.totalorder %s35, 1
      %p215 = por %p213, %p214
      %p217 = scmp.ne.s32.totalorder %s202, %s216
      %p218 = scmp.eq.s32.totalorder %s35, 0
      %p219 = por %p217, %p218
      %s221 = sadd.s32 %s220, 1
      %p224 = scmp.eq.s32.totalorder %s29, 1
      %p225 = scmp.ne.s32.totalorder %s220, %s222
      %p226 = scmp.eq.s32.totalorder %s29, 0
      %p227 = por %p225, %p226
      %p228 = scmp.ne.s32.totalorder %s220, %s222
      %p229 = scmp.eq.s32.totalorder %s34, 1
      %p230 = por %p228, %p229
      %p231 = scmp.ne.s32.totalorder %s222, %s223
      %p232 = scmp.eq.s32.totalorder %s34, 0
      %p233 = por %p231, %p232
      %p234 = scmp.ne.s32.totalorder %s222, %s223
      %p235 = scmp.eq.s32.totalorder %s35, 1
      %p236 = por %p234, %p235
      %p238 = scmp.ne.s32.totalorder %s223, %s237
      %p239 = scmp.eq.s32.totalorder %s35, 0
      %p240 = por %p238, %p239
      %s242 = sadd.s32 %s241, 1
      %p245 = scmp.eq.s32.totalorder %s29, 1
      %p246 = scmp.ne.s32.totalorder %s241, %s243
      %p247 = scmp.eq.s32.totalorder %s29, 0
      %p248 = por %p246, %p247
      %p249 = scmp.ne.s32.totalorder %s241, %s243
      %p250 = scmp.eq.s32.totalorder %s34, 1
      %p251 = por %p249, %p250
      %p252 = scmp.ne.s32.totalorder %s243, %s244
      %p253 = scmp.eq.s32.totalorder %s34, 0
      %p254 = por %p252, %p253
      %p255 = scmp.ne.s32.totalorder %s243, %s244
      %p256 = scmp.eq.s32.totalorder %s35, 1
      %p257 = por %p255, %p256
      %p259 = scmp.ne.s32.totalorder %s244, %s258
      %p260 = scmp.eq.s32.totalorder %s35, 0
      %p261 = por %p259, %p260
      %s263 = sadd.s32 %s262, 1
      %p266 = scmp.eq.s32.totalorder %s29, 1
      %p267 = scmp.ne.s32.totalorder %s262, %s264
      %p268 = scmp.eq.s32.totalorder %s29, 0
      %p269 = por %p267, %p268
      %p270 = scmp.ne.s32.totalorder %s262, %s264
      %p271 = scmp.eq.s32.totalorder %s34, 1
      %p272 = por %p270, %p271
      %p273 = scmp.ne.s32.totalorder %s264, %s265
      %p274 = scmp.eq.s32.totalorder %s34, 0
      %p275 = por %p273, %p274
      %p276 = scmp.ne.s32.totalorder %s264, %s265
      %p277 = scmp.eq.s32.totalorder %s35, 1
      %p278 = por %p276, %p277
      %p280 = scmp.ne.s32.totalorder %s265, %s279
      %p281 = scmp.eq.s32.totalorder %s35, 0
      %p282 = por %p280, %p281
      %s284 = sadd.s32 %s283, 1
      %p287 = scmp.eq.s32.totalorder %s29, 1
      %p288 = scmp.ne.s32.totalorder %s283, %s285
      %p289 = scmp.eq.s32.totalorder %s29, 0
      %p290 = por %p288, %p289
      %p291 = scmp.ne.s32.totalorder %s283, %s285
      %p292 = scmp.eq.s32.totalorder %s34, 1
      %p293 = por %p291, %p292
      %p294 = scmp.ne.s32.totalorder %s285, %s286
      %p295 = scmp.eq.s32.totalorder %s34, 0
      %p296 = por %p294, %p295
      %p297 = scmp.ne.s32.totalorder %s285, %s286
      %p298 = scmp.eq.s32.totalorder %s35, 1
      %p299 = por %p297, %p298
      %p301 = scmp.ne.s32.totalorder %s286, %s300
      %p302 = scmp.eq.s32.totalorder %s35, 0
      %p303 = por %p301, %p302
      %s305 = sadd.s32 %s304, 1
      %p308 = scmp.eq.s32.totalorder %s29, 1
      %p309 = scmp.ne.s32.totalorder %s304, %s306
      %p310 = scmp.eq.s32.totalorder %s29, 0
      %p311 = por %p309, %p310
      %p312 = scmp.ne.s32.totalorder %s304, %s306
      %p313 = scmp.eq.s32.totalorder %s34, 1
      %p314 = por %p312, %p313
      %p315 = scmp.ne.s32.totalorder %s306, %s307
      %p316 = scmp.eq.s32.totalorder %s34, 0
      %p317 = por %p315, %p316
      %p318 = scmp.ne.s32.totalorder %s306, %s307
      %p319 = scmp.eq.s32.totalorder %s35, 1
      %p320 = por %p318, %p319
      %p322 = scmp.ne.s32.totalorder %s307, %s321
      %p323 = scmp.eq.s32.totalorder %s35, 0
      %p324 = por %p322, %p323
      %s326 = sadd.s32 %s325, 1
      %p329 = scmp.eq.s32.totalorder %s29, 1
      %p330 = scmp.ne.s32.totalorder %s325, %s327
      %p331 = scmp.eq.s32.totalorder %s29, 0
      %p332 = por %p330, %p331
      %p333 = scmp.ne.s32.totalorder %s325, %s327
      %p334 = scmp.eq.s32.totalorder %s34, 1
      %p335 = por %p333, %p334
      %p336 = scmp.ne.s32.totalorder %s327, %s328
      %p337 = scmp.eq.s32.totalorder %s34, 0
      %p338 = por %p336, %p337
      %p339 = scmp.ne.s32.totalorder %s327, %s328
      %p340 = scmp.eq.s32.totalorder %s35, 1
      %p341 = por %p339, %p340
      %p343 = scmp.ne.s32.totalorder %s328, %s342
      %p344 = scmp.eq.s32.totalorder %s35, 0
      %p345 = por %p343, %p344
      %s347 = sadd.s32 %s346, 1
      %p350 = scmp.eq.s32.totalorder %s29, 1
      %p351 = scmp.ne.s32.totalorder %s346, %s348
      %p352 = scmp.eq.s32.totalorder %s29, 0
      %p353 = por %p351, %p352
      %p354 = scmp.ne.s32.totalorder %s346, %s348
      %p355 = scmp.eq.s32.totalorder %s34, 1
      %p356 = por %p354, %p355
      %p357 = scmp.ne.s32.totalorder %s348, %s349
      %p358 = scmp.eq.s32.totalorder %s34, 0
      %p359 = por %p357, %p358
      %p360 = scmp.ne.s32.totalorder %s348, %s349
      %p361 = scmp.eq.s32.totalorder %s35, 1
      %p362 = por %p360, %p361
      %p364 = scmp.ne.s32.totalorder %s349, %s363
      %p365 = scmp.eq.s32.totalorder %s35, 0
      %p366 = por %p364, %p365
      %s368 = sadd.s32 %s367, 1
      %p371 = scmp.eq.s32.totalorder %s29, 1
      %p372 = scmp.ne.s32.totalorder %s367, %s369
      %p373 = scmp.eq.s32.totalorder %s29, 0
      %p374 = por %p372, %p373
      %p375 = scmp.ne.s32.totalorder %s367, %s369
      %p376 = scmp.eq.s32.totalorder %s34, 1
      %p377 = por %p375, %p376
      %p378 = scmp.ne.s32.totalorder %s369, %s370
      %p379 = scmp.eq.s32.totalorder %s34, 0
      %p380 = por %p378, %p379
      %p381 = scmp.ne.s32.totalorder %s369, %s370
      %p382 = scmp.eq.s32.totalorder %s35, 1
      %p383 = por %p381, %p382
      %p385 = scmp.ne.s32.totalorder %s370, %s384
      %p386 = scmp.eq.s32.totalorder %s35, 0
      %p387 = por %p385, %p386
      %s389 = sadd.s32 %s388, 1
      %p392 = scmp.eq.s32.totalorder %s29, 1
      %p393 = scmp.ne.s32.totalorder %s388, %s390
      %p394 = scmp.eq.s32.totalorder %s29, 0
      %p395 = por %p393, %p394
      %p396 = scmp.ne.s32.totalorder %s388, %s390
      %p397 = scmp.eq.s32.totalorder %s34, 1
      %p398 = por %p396, %p397
      %p399 = scmp.ne.s32.totalorder %s390, %s391
      %p400 = scmp.eq.s32.totalorder %s34, 0
      %p401 = por %p399, %p400
      %p402 = scmp.ne.s32.totalorder %s390, %s391
      %p403 = scmp.eq.s32.totalorder %s35, 1
      %p404 = por %p402, %p403
      %p406 = scmp.ne.s32.totalorder %s391, %s405
      %p407 = scmp.eq.s32.totalorder %s35, 0
      %p408 = por %p406, %p407
      %s410 = sadd.s32 %s409, 1
      %p413 = scmp.eq.s32.totalorder %s29, 1
      %p414 = scmp.ne.s32.totalorder %s409, %s411
      %p415 = scmp.eq.s32.totalorder %s29, 0
      %p416 = por %p414, %p415
      %p417 = scmp.ne.s32.totalorder %s409, %s411
      %p418 = scmp.eq.s32.totalorder %s34, 1
      %p419 = por %p417, %p418
      %p420 = scmp.ne.s32.totalorder %s411, %s412
      %p421 = scmp.eq.s32.totalorder %s34, 0
      %p422 = por %p420, %p421
      %p423 = scmp.ne.s32.totalorder %s411, %s412
      %p424 = scmp.eq.s32.totalorder %s35, 1
      %p425 = por %p423, %p424
      %p427 = scmp.ne.s32.totalorder %s412, %s426
      %p428 = scmp.eq.s32.totalorder %s35, 0
      %p429 = por %p427, %p428
      %s431 = sadd.s32 %s430, 1
      %p434 = scmp.eq.s32.totalorder %s29, 1
      %p435 = scmp.ne.s32.totalorder %s430, %s432
      %p436 = scmp.eq.s32.totalorder %s29, 0
      %p437 = por %p435, %p436
      %p438 = scmp.ne.s32.totalorder %s430, %s432
      %p439 = scmp.eq.s32.totalorder %s34, 1
      %p440 = por %p438, %p439
      %p441 = scmp.ne.s32.totalorder %s432, %s433
      %p442 = scmp.eq.s32.totalorder %s34, 0
      %p443 = por %p441, %p442
      %p444 = scmp.ne.s32.totalorder %s432, %s433
      %p445 = scmp.eq.s32.totalorder %s35, 1
      %p446 = por %p444, %p445
      %p448 = scmp.ne.s32.totalorder %s433, %s447
      %p449 = scmp.eq.s32.totalorder %s35, 0
      %p450 = por %p448, %p449
      %s451 = ssub.s32 %s29, %s36
      %p452 = scmp.eq.s32.totalorder %s451, 0
      %s454 = sadd.s32 %s453, 1
      %s455 = scalar_select %p452, %s453, %s454
      %p458 = pneg %p452
      %p459 = scmp.eq.s32.totalorder %s29, 1
      %p460 = por %p458, %p459
      %p461 = scmp.ne.s32.totalorder %s453, %s456
      %p462 = scmp.eq.s32.totalorder %s29, 0
      %p463 = por %p461, %p462
      %p464 = scmp.ne.s32.totalorder %s453, %s456
      %p465 = scmp.eq.s32.totalorder %s34, 1
      %p466 = por %p464, %p465
      %p467 = scmp.ne.s32.totalorder %s456, %s457
      %p468 = scmp.eq.s32.totalorder %s34, 0
      %p469 = por %p467, %p468
      %p470 = scmp.ne.s32.totalorder %s456, %s457
      %p471 = scmp.eq.s32.totalorder %s35, 1
      %p472 = por %p470, %p471
      %p474 = scmp.ne.s32.totalorder %s457, %s473
      %p475 = scmp.eq.s32.totalorder %s35, 0
      %p476 = por %p474, %p475
      %p477 = scmp.le.s32.totalorder 1, %s29
      %p478 = scmp.lt.s32.totalorder %s29, 3
      %p479 = pnand %p477, %p478
      %p480 = pneg %p479
      // Predicated region
      $region9: #{encoder_layer.1} parent=5 // pred_check
        _
      $region10: #{encoder_layer.1} parent=5 // pred_check_branch
        %482 = sbr.rel (%p479) target = $region12
      $region11: #{encoder_layer.1} parent=5 // pred_region
        %s483 = ssub.s32 %s29, 1
        // Predicated region
        $region13: #{encoder_layer.1} parent=11 // pred_check
          %p484 = pneg %p128
        $region14: #{encoder_layer.1} parent=11 // pred_check_branch
          %486 = sbr.rel (%p484) target = $region16
        $region15: #{encoder_layer.1} parent=11 // pred_region
          _
        $region16: #{encoder_layer.1} parent=11 // pred_fallthru
          _
        // Predicated region
        $region17: #{encoder_layer.1} parent=11 // pred_check
          %p487 = pneg %p149
        $region18: #{encoder_layer.1} parent=11 // pred_check_branch
          %489 = sbr.rel (%p487) target = $region20
        $region19: #{encoder_layer.1} parent=11 // pred_region
          _
        $region20: #{encoder_layer.1} parent=11 // pred_fallthru
          _
        // Predicated region
        $region21: #{encoder_layer.1} parent=11 // pred_check
          %p490 = pneg %p170
        $region22: #{encoder_layer.1} parent=11 // pred_check_branch
          %492 = sbr.rel (%p490) target = $region24
        $region23: #{encoder_layer.1} parent=11 // pred_region
          _
        $region24: #{encoder_layer.1} parent=11 // pred_fallthru
          _
        // Predicated region
        $region25: #{encoder_layer.1} parent=11 // pred_check
          %p493 = pneg %p191
        $region26: #{encoder_layer.1} parent=11 // pred_check_branch
          %495 = sbr.rel (%p493) target = $region28
        $region27: #{encoder_layer.1} parent=11 // pred_region
          _
        $region28: #{encoder_layer.1} parent=11 // pred_fallthru
          _
        // Predicated region
        $region29: #{encoder_layer.1} parent=11 // pred_check
          %p496 = pneg %p212
        $region30: #{encoder_layer.1} parent=11 // pred_check_branch
          %498 = sbr.rel (%p496) target = $region32
        $region31: #{encoder_layer.1} parent=11 // pred_region
          _
        $region32: #{encoder_layer.1} parent=11 // pred_fallthru
          _
        // Predicated region
        $region33: #{encoder_layer.1} parent=11 // pred_check
          %p499 = pneg %p233
        $region34: #{encoder_layer.1} parent=11 // pred_check_branch
          %501 = sbr.rel (%p499) target = $region36
        $region35: #{encoder_layer.1} parent=11 // pred_region
          _
        $region36: #{encoder_layer.1} parent=11 // pred_fallthru
          _
        // Predicated region
        $region37: #{encoder_layer.1} parent=11 // pred_check
          %p502 = pneg %p254
        $region38: #{encoder_layer.1} parent=11 // pred_check_branch
          %504 = sbr.rel (%p502) target = $region40
        $region39: #{encoder_layer.1} parent=11 // pred_region
          _
        $region40: #{encoder_layer.1} parent=11 // pred_fallthru
          _
        // Predicated region
        $region41: #{encoder_layer.1} parent=11 // pred_check
          %p505 = pneg %p275
        $region42: #{encoder_layer.1} parent=11 // pred_check_branch
          %507 = sbr.rel (%p505) target = $region44
        $region43: #{encoder_layer.1} parent=11 // pred_region
          _
        $region44: #{encoder_layer.1} parent=11 // pred_fallthru
          _
        // Predicated region
        $region45: #{encoder_layer.1} parent=11 // pred_check
          %p508 = pneg %p296
        $region46: #{encoder_layer.1} parent=11 // pred_check_branch
          %510 = sbr.rel (%p508) target = $region48
        $region47: #{encoder_layer.1} parent=11 // pred_region
          _
        $region48: #{encoder_layer.1} parent=11 // pred_fallthru
          _
        // Predicated region
        $region49: #{encoder_layer.1} parent=11 // pred_check
          %p511 = pneg %p317
        $region50: #{encoder_layer.1} parent=11 // pred_check_branch
          %513 = sbr.rel (%p511) target = $region52
        $region51: #{encoder_layer.1} parent=11 // pred_region
          _
        $region52: #{encoder_layer.1} parent=11 // pred_fallthru
          _
        // Predicated region
        $region53: #{encoder_layer.1} parent=11 // pred_check
          %p514 = pneg %p338
        $region54: #{encoder_layer.1} parent=11 // pred_check_branch
          %516 = sbr.rel (%p514) target = $region56
        $region55: #{encoder_layer.1} parent=11 // pred_region
          _
        $region56: #{encoder_layer.1} parent=11 // pred_fallthru
          _
        // Predicated region
        $region57: #{encoder_layer.1} parent=11 // pred_check
          %p517 = pneg %p359
        $region58: #{encoder_layer.1} parent=11 // pred_check_branch
          %519 = sbr.rel (%p517) target = $region60
        $region59: #{encoder_layer.1} parent=11 // pred_region
          %s521 = ssub.s32 16, 16
          %522 = vsyncadd [#allocation3], %s521
          %s524 = sshll.u32 [#allocation2], 4
          %s525 = int_to_ptr.vmem [resolvable:$true] %s524
          %527 = dma.hbm_to_vmem [thread:$0]  %s14, 16, %s525, [#allocation3]
        $region60: #{encoder_layer.1} parent=11 // pred_fallthru
          _
        // Predicated region
        $region61: #{encoder_layer.1} parent=11 // pred_check
          %p528 = pneg %p380
        $region62: #{encoder_layer.1} parent=11 // pred_check_branch
          %530 = sbr.rel (%p528) target = $region64
        $region63: #{encoder_layer.1} parent=11 // pred_region
          _
        $region64: #{encoder_layer.1} parent=11 // pred_fallthru
          _
        // Predicated region
        $region65: #{encoder_layer.1} parent=11 // pred_check
          %p531 = pneg %p401
        $region66: #{encoder_layer.1} parent=11 // pred_check_branch
          %533 = sbr.rel (%p531) target = $region68
        $region67: #{encoder_layer.1} parent=11 // pred_region
          _
        $region68: #{encoder_layer.1} parent=11 // pred_fallthru
          _
        // Predicated region
        $region69: #{encoder_layer.1} parent=11 // pred_check
          %p534 = pneg %p422
        $region70: #{encoder_layer.1} parent=11 // pred_check_branch
          %536 = sbr.rel (%p534) target = $region72
        $region71: #{encoder_layer.1} parent=11 // pred_region
          _
        $region72: #{encoder_layer.1} parent=11 // pred_fallthru
          _
        // Predicated region
        $region73: #{encoder_layer.1} parent=11 // pred_check
          %p537 = pneg %p443
        $region74: #{encoder_layer.1} parent=11 // pred_check_branch
          %539 = sbr.rel (%p537) target = $region76
        $region75: #{encoder_layer.1} parent=11 // pred_region
          _
        $region76: #{encoder_layer.1} parent=11 // pred_fallthru
          _
      $region12: #{encoder_layer.1} parent=5 // pred_fallthru
        _
      %p540 = scmp.lt.s32.totalorder %s29, 2
      // Predicated region
      $region77: #{encoder_layer.1} parent=5 // pred_check
        %p541 = pneg %p540
      $region78: #{encoder_layer.1} parent=5 // pred_check_branch
        %543 = sbr.rel (%p541) target = $region80
      $region79: #{encoder_layer.1} parent=5 // pred_region
        // Predicated region
        $region81: #{encoder_layer.1} parent=79 // pred_check
          %p544 = pneg %p49
        $region82: #{encoder_layer.1} parent=79 // pred_check_branch
          %546 = sbr.rel (%p544) target = $region84
        $region83: #{encoder_layer.1} parent=79 // pred_region
          %p547 = scmp.lt.s32.totalorder %s29, 1
          %s548 = scalar_select %p547, %s29, 1
          %s549 = smul.addr %s548, 8
          %s550 = scalar_lea.vmem %s0, %s549
        $region84: #{encoder_layer.1} parent=79 // pred_fallthru
          _
        // Predicated region
        $region85: #{encoder_layer.1} parent=79 // pred_check
          %p551 = pneg %p75
        $region86: #{encoder_layer.1} parent=79 // pred_check_branch
          %553 = sbr.rel (%p551) target = $region88
        $region87: #{encoder_layer.1} parent=79 // pred_region
          %p554 = scmp.lt.s32.totalorder %s29, 1
          %s555 = scalar_select %p554, %s29, 1
          %s556 = smul.addr %s555, 4
          %s557 = scalar_lea.vmem %s1, %s556
        $region88: #{encoder_layer.1} parent=79 // pred_fallthru
          _
        // Predicated region
        $region89: #{encoder_layer.1} parent=79 // pred_check
          %p558 = pneg %p101
        $region90: #{encoder_layer.1} parent=79 // pred_check_branch
          %560 = sbr.rel (%p558) target = $region92
        $region91: #{encoder_layer.1} parent=79 // pred_region
          %p561 = scmp.lt.s32.totalorder %s29, 1
          %s562 = scalar_select %p561, %s29, 1
          %s563 = smul.addr %s562, 4
          %s564 = scalar_lea.vmem %s2, %s563
        $region92: #{encoder_layer.1} parent=79 // pred_fallthru
          _
      $region80: #{encoder_layer.1} parent=5 // pred_fallthru
        _
      %p565 = scmp.le.s32.totalorder 1, %s29
      %p566 = scmp.lt.s32.totalorder %s29, 3
      %p567 = pnand %p565, %p566
      %p568 = pneg %p567
      // Predicated region
      $region93: #{encoder_layer.1} parent=5 // pred_check
        _
      $region94: #{encoder_layer.1} parent=5 // pred_check_branch
        %570 = sbr.rel (%p567) target = $region96
      $region95: #{encoder_layer.1} parent=5 // pred_region
        %s571 = ssub.s32 %s29, 1
        // Predicated region
        $region97: #{encoder_layer.1} parent=95 // pred_check
          %p572 = pneg %p359
        $region98: #{encoder_layer.1} parent=95 // pred_check_branch
          %574 = sbr.rel (%p572) target = $region100
        $region99: #{encoder_layer.1} parent=95 // pred_region
          %575 = dma.done [#allocation3], 16
        $region100: #{encoder_layer.1} parent=95 // pred_fallthru
          _
        %p576 = scmp.lt.s32.totalorder %s34, 1
        %s577 = scalar_select %p576, %s34, 1
        %s578 = smul.addr %s577, 8
        %s579 = scalar_lea.vmem %s0, %s578
        %p580 = pneg %p55
        %p581 = pneg %p52
        %p582 = scmp.lt.s32.totalorder %s34, 1
        %s583 = scalar_select %p582, %s34, 1
        %s584 = smul.addr %s583, 4
        %s585 = scalar_lea.vmem %s1, %s584
        %p586 = pneg %p81
        %p587 = pneg %p78
        %p588 = scmp.lt.s32.totalorder %s34, 1
        %s589 = scalar_select %p588, %s34, 1
        %s590 = smul.addr %s589, 4
        %s591 = scalar_lea.vmem %s2, %s590
        %p592 = pneg %p107
        %p593 = pneg %p104
        %p594 = pneg %p128
        %p595 = pneg %p125
        %p596 = pneg %p149
        %p597 = pneg %p146
        %p598 = pneg %p170
        %p599 = pneg %p167
        %p600 = pneg %p191
        %p601 = pneg %p188
        %p602 = pneg %p212
        %p603 = pneg %p209
        %p604 = pneg %p233
        %p605 = pneg %p230
        %p606 = pneg %p254
        %p607 = pneg %p251
        %p608 = pneg %p275
        %p609 = pneg %p272
        %p610 = pneg %p296
        %p611 = pneg %p293
        %p612 = pneg %p317
        %p613 = pneg %p314
        %p614 = pneg %p338
        %p615 = pneg %p335
        %p616 = pneg %p359
        %p617 = pneg %p356
        %p618 = pneg %p380
        %p619 = pneg %p377
        %p620 = pneg %p401
        %p621 = pneg %p398
        %p622 = pneg %p422
        %p623 = pneg %p419
        %p624 = pneg %p443
        %p625 = pneg %p440
        %p626 = pneg %p469
        %p627 = pneg %p466
        %s628 = sand.u32 %s456, 1
        %s629 = scalar_lea.sflag [#allocation4], %s628
        %s630 = sand.u32 %s456, 1
        %s631 = smul.addr %s630, 8
        %s632 = scalar_lea.vmem [#allocation5], %s631
        %p633 = scmp.lt.s32.totalorder %s34, 1
        %s634 = scalar_select %p633, %s34, 1
        %s635 = smul.addr %s634, 8
        %s636 = scalar_lea.vmem %s0, %s635
        %p637 = scmp.lt.s32.totalorder %s34, 1
        %s638 = scalar_select %p637, %s34, 1
        %s639 = smul.addr %s638, 4
        %s640 = scalar_lea.vmem %s1, %s639
        %p641 = scmp.lt.s32.totalorder %s34, 1
        %s642 = scalar_select %p641, %s34, 1
        %s643 = smul.addr %s642, 4
        %s644 = scalar_lea.vmem %s2, %s643
        %v646 = vld [vmem:[%s636] sm:$0xff]
        %v647 = vpack.c.bf16 %v646, %v646
        %v648 = vld [vmem:[%s3] sm:$0xf]
        %v649 = vld [vmem:[%s3 + $0x4] sm:$0xf]
        %v650 = vld [vmem:[%s3 + $0x8] sm:$0xf]
        %v651 = vld [vmem:[%s3 + $0xc] sm:$0xf]
        %v652 = vld [vmem:[%s6] sm:$0x1]
        %v654 = vlaneseq
        %v655 = vshrl.u32 %v654, 7
        %v656 = vsub.s32 0, %v655
        %v657 = vrot.slane %v652, %v656
        %v663 = vunpack.c.l.b16 %v648
        %v664 = vunpack.c.l.b16 %v649
        %v665 = vunpack.c.l.b16 %v650
        %v666 = vunpack.c.l.b16 %v651
        %v667 = vpack.c.b16 %v664, %v663
        %v668 = vpack.c.b16 %v666, %v665
        %vm671 = vcmask 261120
        %v673 = vsel %vm671, %v647, 0
        %675 = vmatprep.subr.bf16.mxu0 0
        %676 = vmatpush1.bf16.msra.mxu0 0
        %677 = vmatprep.subr.bf16.mxu0 0
        %678 = vmatpush1.bf16.msra.mxu0 0
        %679 = vmatprep.subr.bf16.mxu0 0
        %680 = vmatpush1.bf16.msra.mxu0 0
        %681 = vmatprep.subr.bf16.mxu0 0
        %682 = vmatpush1.bf16.msra.mxu0 0
        %683 = vmatprep.subr.bf16.mxu0 0
        %684 = vmatpush1.bf16.msra.mxu0 0
        %685 = vmatprep.subr.bf16.mxu0 0
        %686 = vmatpush1.bf16.msra.mxu0 0
        %687 = vmatprep.subr.bf16.mxu0 0
        %688 = vmatpush1.bf16.msra.mxu0 %v668
        %689 = vmatprep.subr.bf16.mxu0 0
        %690 = vmatpush1.bf16.msra.mxu0 %v667
        %691 = vmatprep.subr.bf16.mxu0 0
        %692 = vmatpush2.bf16.msra.mxu0 0
        %693 = vmatprep.subr.bf16.mxu0 0
        %694 = vmatpush2.bf16.msra.mxu0 0
        %695 = vmatprep.subr.bf16.mxu0 0
        %696 = vmatpush2.bf16.msra.mxu0 0
        %697 = vmatprep.subr.bf16.mxu0 0
        %698 = vmatpush2.bf16.msra.mxu0 0
        %699 = vmatprep.subr.bf16.mxu0 0
        %700 = vmatpush2.bf16.msra.mxu0 0
        %701 = vmatprep.subr.bf16.mxu0 0
        %702 = vmatpush2.bf16.msra.mxu0 0
        %703 = vmatprep.subr.bf16.mxu0 0
        %704 = vmatpush2.bf16.msra.mxu0 0
        %705 = vmatprep.subr.bf16.mxu0 0
        %706 = vmatpush2.bf16.msra.mxu0 0
        %707 = vmatprep.mubr.bf16.mxu0 0
        %708 = vmatmul.mubr.bf16.gmra.mxu0 %v673
        %v709 = vpop.f32.mrf.mxu0
        %v710 = vadd.f32 %v657, %v709
        %v711 = vpop.f32.mrf.mxu0
        %v712 = vpop.f32.mrf.mxu0
        %v713 = vpop.f32.mrf.mxu0
        %714 = vdwg.mxu0
        %v715 = vld [vmem:[%s640] sm:$0xf]
        %v716 = vld [vmem:[%s4] sm:$0xf]
        %v717 = vld [vmem:[%s4 + $0x4] sm:$0xf]
        %v718 = vld [vmem:[%s4 + $0x8] sm:$0xf]
        %v719 = vld [vmem:[%s4 + $0xc] sm:$0xf]
        %v720 = vld [vmem:[%s7] sm:$0x1]
        %v722 = vlaneseq
        %v723 = vshrl.u32 %v722, 7
        %v724 = vsub.s32 0, %v723
        %v725 = vrot.slane %v720, %v724
        %v731 = vunpack.c.l.b16 %v716
        %v732 = vunpack.c.l.b16 %v717
        %v733 = vunpack.c.l.b16 %v718
        %v734 = vunpack.c.l.b16 %v719
        %v735 = vpack.c.b16 %v732, %v731
        %v736 = vpack.c.b16 %v734, %v733
        %v740 = vsel %vm671, %v715, 0
        %742 = vmatprep.subr.bf16.mxu0 0
        %743 = vmatpush1.bf16.msra.mxu0 0
        %744 = vmatprep.subr.bf16.mxu0 0
        %745 = vmatpush1.bf16.msra.mxu0 0
        %746 = vmatprep.subr.bf16.mxu0 0
        %747 = vmatpush1.bf16.msra.mxu0 0
        %748 = vmatprep.subr.bf16.mxu0 0
        %749 = vmatpush1.bf16.msra.mxu0 0
        %750 = vmatprep.subr.bf16.mxu0 0
        %751 = vmatpush1.bf16.msra.mxu0 0
        %752 = vmatprep.subr.bf16.mxu0 0
        %753 = vmatpush1.bf16.msra.mxu0 0
        %754 = vmatprep.subr.bf16.mxu0 0
        %755 = vmatpush1.bf16.msra.mxu0 %v736
        %756 = vmatprep.subr.bf16.mxu0 0
        %757 = vmatpush1.bf16.msra.mxu0 %v735
        %758 = vmatprep.subr.bf16.mxu0 0
        %759 = vmatpush2.bf16.msra.mxu0 0
        %760 = vmatprep.subr.bf16.mxu0 0
        %761 = vmatpush2.bf16.msra.mxu0 0
        %762 = vmatprep.subr.bf16.mxu0 0
        %763 = vmatpush2.bf16.msra.mxu0 0
        %764 = vmatprep.subr.bf16.mxu0 0
        %765 = vmatpush2.bf16.msra.mxu0 0
        %766 = vmatprep.subr.bf16.mxu0 0
        %767 = vmatpush2.bf16.msra.mxu0 0
        %768 = vmatprep.subr.bf16.mxu0 0
        %769 = vmatpush2.bf16.msra.mxu0 0
        %770 = vmatprep.subr.bf16.mxu0 0
        %771 = vmatpush2.bf16.msra.mxu0 0
        %772 = vmatprep.subr.bf16.mxu0 0
        %773 = vmatpush2.bf16.msra.mxu0 0
        %774 = vmatprep.mubr.bf16.mxu0 0
        %775 = vmatmul.mubr.bf16.gmra.mxu0 %v740
        %v776 = vpop.f32.mrf.mxu0
        %v777 = vadd.f32 %v725, %v776
        %v778 = vpop.f32.mrf.mxu0
        %v779 = vpop.f32.mrf.mxu0
        %v780 = vpop.f32.mrf.mxu0
        %781 = vdwg.mxu0
        %v782 = vld [vmem:[%s644] sm:$0xf]
        %v783 = vld [vmem:[%s5] sm:$0xf]
        %v784 = vld [vmem:[%s5 + $0x4] sm:$0xf]
        %v785 = vld [vmem:[%s5 + $0x8] sm:$0xf]
        %v786 = vld [vmem:[%s5 + $0xc] sm:$0xf]
        %v787 = vld [vmem:[%s8] sm:$0x1]
        %v789 = vlaneseq
        %v790 = vshrl.u32 %v789, 7
        %v791 = vsub.s32 0, %v790
        %v792 = vrot.slane %v787, %v791
        %v798 = vunpack.c.l.b16 %v783
        %v799 = vunpack.c.l.b16 %v784
        %v800 = vunpack.c.l.b16 %v785
        %v801 = vunpack.c.l.b16 %v786
        %v802 = vpack.c.b16 %v799, %v798
        %v803 = vpack.c.b16 %v801, %v800
        %v807 = vsel %vm671, %v782, 0
        %809 = vmatprep.subr.bf16.mxu0 0
        %810 = vmatpush1.bf16.msra.mxu0 0
        %811 = vmatprep.subr.bf16.mxu0 0
        %812 = vmatpush1.bf16.msra.mxu0 0
        %813 = vmatprep.subr.bf16.mxu0 0
        %814 = vmatpush1.bf16.msra.mxu0 0
        %815 = vmatprep.subr.bf16.mxu0 0
        %816 = vmatpush1.bf16.msra.mxu0 0
        %817 = vmatprep.subr.bf16.mxu0 0
        %818 = vmatpush1.bf16.msra.mxu0 0
        %819 = vmatprep.subr.bf16.mxu0 0
        %820 = vmatpush1.bf16.msra.mxu0 0
        %821 = vmatprep.subr.bf16.mxu0 0
        %822 = vmatpush1.bf16.msra.mxu0 %v803
        %823 = vmatprep.subr.bf16.mxu0 0
        %824 = vmatpush1.bf16.msra.mxu0 %v802
        %825 = vmatprep.subr.bf16.mxu0 0
        %826 = vmatpush2.bf16.msra.mxu0 0
        %827 = vmatprep.subr.bf16.mxu0 0
        %828 = vmatpush2.bf16.msra.mxu0 0
        %829 = vmatprep.subr.bf16.mxu0 0
        %830 = vmatpush2.bf16.msra.mxu0 0
        %831 = vmatprep.subr.bf16.mxu0 0
        %832 = vmatpush2.bf16.msra.mxu0 0
        %833 = vmatprep.subr.bf16.mxu0 0
        %834 = vmatpush2.bf16.msra.mxu0 0
        %835 = vmatprep.subr.bf16.mxu0 0
        %836 = vmatpush2.bf16.msra.mxu0 0
        %837 = vmatprep.subr.bf16.mxu0 0
        %838 = vmatpush2.bf16.msra.mxu0 0
        %839 = vmatprep.subr.bf16.mxu0 0
        %840 = vmatpush2.bf16.msra.mxu0 0
        %841 = vmatprep.mubr.bf16.mxu0 0
        %842 = vmatmul.mubr.bf16.gmra.mxu0 %v807
        %v843 = vpop.f32.mrf.mxu0
        %v844 = vadd.f32 %v792, %v843
        %v845 = vpop.f32.mrf.mxu0
        %v846 = vpop.f32.mrf.mxu0
        %v847 = vpop.f32.mrf.mxu0
        %848 = vdwg.mxu0
        %v849 = vpack.c.bf16 %v710, %v710
        %v850 = vpack.c.bf16 %v777, %v777
        %v851 = vpack.c.bf16 %v844, %v844
        %vm852 = vcmask 64512
        %v854 = vsel %vm852, %v849, 0
        %v857 = vsel %vm852, %v850, 0
        %859 = vmatprep.subr.bf16.mxu0 0
        %860 = vmatpush1.bf16.xpose.msra.mxu0 0
        %861 = vmatprep.subr.bf16.mxu0 0
        %862 = vmatpush1.bf16.xpose.msra.mxu0 0
        %863 = vmatprep.subr.bf16.mxu0 0
        %864 = vmatpush1.bf16.xpose.msra.mxu0 0
        %865 = vmatprep.subr.bf16.mxu0 0
        %866 = vmatpush1.bf16.xpose.msra.mxu0 0
        %867 = vmatprep.subr.bf16.mxu0 0
        %868 = vmatpush1.bf16.xpose.msra.mxu0 0
        %869 = vmatprep.subr.bf16.mxu0 0
        %870 = vmatpush1.bf16.xpose.msra.mxu0 0
        %871 = vmatprep.subr.bf16.mxu0 0
        %872 = vmatpush1.bf16.xpose.msra.mxu0 0
        %873 = vmatprep.subr.bf16.mxu0 0
        %874 = vmatpush1.bf16.xpose.msra.mxu0 %v857
        %875 = vmatprep.subr.bf16.mxu0 0
        %876 = vmatpush2.bf16.xpose.msra.mxu0 0
        %877 = vmatprep.subr.bf16.mxu0 0
        %878 = vmatpush2.bf16.xpose.msra.mxu0 0
        %879 = vmatprep.subr.bf16.mxu0 0
        %880 = vmatpush2.bf16.xpose.msra.mxu0 0
        %881 = vmatprep.subr.bf16.mxu0 0
        %882 = vmatpush2.bf16.xpose.msra.mxu0 0
        %883 = vmatprep.subr.bf16.mxu0 0
        %884 = vmatpush2.bf16.xpose.msra.mxu0 0
        %885 = vmatprep.subr.bf16.mxu0 0
        %886 = vmatpush2.bf16.xpose.msra.mxu0 0
        %887 = vmatprep.subr.bf16.mxu0 0
        %888 = vmatpush2.bf16.xpose.msra.mxu0 0
        %889 = vmatprep.subr.bf16.mxu0 0
        %890 = vmatpush2.bf16.xpose.msra.mxu0 0
        %891 = vmatprep.mubr.bf16.mxu0 0
        %892 = vmatmul.mubr.bf16.gmra.mxu0 %v854
        %v893 = vpop.f32.mrf.mxu0
        %v894 = vadd.f32 0.0, %v893
        %v895 = vpop.f32.mrf.mxu0
        %v896 = vpop.f32.mrf.mxu0
        %v897 = vpop.f32.mrf.mxu0
        %898 = vdwg.mxu0
        %v899 = vsel %vm852, %v894, -inf
        %900 = vmax.xlane.f32.xlu0 %v899
        %v901 = vpop.xlane.xlu0 %900
        %v902 = vsub.f32 %v894, %v901
        %v903 = vmul.f32 %v902, 1.442695
        %v904 = vpow.pop %v903
        %v905 = vsel %vm852, %v904, 0.0
        %906 = vadd.xlane.f32.xlu0 %v905
        %v907 = vpop.xlane.xlu0 %906
        %v908 = vrcp.pop %v907
        %v909 = vmul.f32 %v904, %v908
        %v910 = vpack.c.bf16 %v909, %v909
        %v912 = vsel %vm852, %v910, 0
        %vm914 = vcmask 1043456
        %v916 = vsel %vm914, %v851, 0
        %918 = vmatprep.subr.bf16.mxu0 0
        %919 = vmatpush1.bf16.msra.mxu0 0
        %920 = vmatprep.subr.bf16.mxu0 0
        %921 = vmatpush1.bf16.msra.mxu0 0
        %922 = vmatprep.subr.bf16.mxu0 0
        %923 = vmatpush1.bf16.msra.mxu0 0
        %924 = vmatprep.subr.bf16.mxu0 0
        %925 = vmatpush1.bf16.msra.mxu0 0
        %926 = vmatprep.subr.bf16.mxu0 0
        %927 = vmatpush1.bf16.msra.mxu0 0
        %928 = vmatprep.subr.bf16.mxu0 0
        %929 = vmatpush1.bf16.msra.mxu0 0
        %930 = vmatprep.subr.bf16.mxu0 0
        %931 = vmatpush1.bf16.msra.mxu0 0
        %932 = vmatprep.subr.bf16.mxu0 0
        %933 = vmatpush1.bf16.msra.mxu0 %v916
        %934 = vmatprep.subr.bf16.mxu0 0
        %935 = vmatpush2.bf16.msra.mxu0 0
        %936 = vmatprep.subr.bf16.mxu0 0
        %937 = vmatpush2.bf16.msra.mxu0 0
        %938 = vmatprep.subr.bf16.mxu0 0
        %939 = vmatpush2.bf16.msra.mxu0 0
        %940 = vmatprep.subr.bf16.mxu0 0
        %941 = vmatpush2.bf16.msra.mxu0 0
        %942 = vmatprep.subr.bf16.mxu0 0
        %943 = vmatpush2.bf16.msra.mxu0 0
        %944 = vmatprep.subr.bf16.mxu0 0
        %945 = vmatpush2.bf16.msra.mxu0 0
        %946 = vmatprep.subr.bf16.mxu0 0
        %947 = vmatpush2.bf16.msra.mxu0 0
        %948 = vmatprep.subr.bf16.mxu0 0
        %949 = vmatpush2.bf16.msra.mxu0 0
        %950 = vmatprep.mubr.bf16.mxu0 0
        %951 = vmatmul.mubr.bf16.gmra.mxu0 %v912
        %v952 = vpop.f32.mrf.mxu0
        %v953 = vadd.f32 0.0, %v952
        %v954 = vpop.f32.mrf.mxu0
        %v955 = vpop.f32.mrf.mxu0
        %v956 = vpop.f32.mrf.mxu0
        %957 = vdwg.mxu0
        %959 = vrot.lane.b32.xlu0 %v849, 120
        %v960 = vpop.permute.xlu0 %959
        %962 = vrot.lane.b32.xlu0 %v850, 120
        %v963 = vpop.permute.xlu0 %962
        %v965 = vsel %vm852, %v960, 0
        %v968 = vsel %vm852, %v963, 0
        %970 = vmatprep.subr.bf16.mxu0 0
        %971 = vmatpush1.bf16.xpose.msra.mxu0 0
        %972 = vmatprep.subr.bf16.mxu0 0
        %973 = vmatpush1.bf16.xpose.msra.mxu0 0
        %974 = vmatprep.subr.bf16.mxu0 0
        %975 = vmatpush1.bf16.xpose.msra.mxu0 0
        %976 = vmatprep.subr.bf16.mxu0 0
        %977 = vmatpush1.bf16.xpose.msra.mxu0 0
        %978 = vmatprep.subr.bf16.mxu0 0
        %979 = vmatpush1.bf16.xpose.msra.mxu0 0
        %980 = vmatprep.subr.bf16.mxu0 0
        %981 = vmatpush1.bf16.xpose.msra.mxu0 0
        %982 = vmatprep.subr.bf16.mxu0 0
        %983 = vmatpush1.bf16.xpose.msra.mxu0 0
        %984 = vmatprep.subr.bf16.mxu0 0
        %985 = vmatpush1.bf16.xpose.msra.mxu0 %v968
        %986 = vmatprep.subr.bf16.mxu0 0
        %987 = vmatpush2.bf16.xpose.msra.mxu0 0
        %988 = vmatprep.subr.bf16.mxu0 0
        %989 = vmatpush2.bf16.xpose.msra.mxu0 0
        %990 = vmatprep.subr.bf16.mxu0 0
        %991 = vmatpush2.bf16.xpose.msra.mxu0 0
        %992 = vmatprep.subr.bf16.mxu0 0
        %993 = vmatpush2.bf16.xpose.msra.mxu0 0
        %994 = vmatprep.subr.bf16.mxu0 0
        %995 = vmatpush2.bf16.xpose.msra.mxu0 0
        %996 = vmatprep.subr.bf16.mxu0 0
        %997 = vmatpush2.bf16.xpose.msra.mxu0 0
        %998 = vmatprep.subr.bf16.mxu0 0
        %999 = vmatpush2.bf16.xpose.msra.mxu0 0
        %1000 = vmatprep.subr.bf16.mxu0 0
        %1001 = vmatpush2.bf16.xpose.msra.mxu0 0
        %1002 = vmatprep.mubr.bf16.mxu0 0
        %1003 = vmatmul.mubr.bf16.gmra.mxu0 %v965
        %v1004 = vpop.f32.mrf.mxu0
        %v1005 = vadd.f32 0.0, %v1004
        %v1006 = vpop.f32.mrf.mxu0
        %v1007 = vpop.f32.mrf.mxu0
        %v1008 = vpop.f32.mrf.mxu0
        %1009 = vdwg.mxu0
        %v1010 = vsel %vm852, %v1005, -inf
        %1011 = vmax.xlane.f32.xlu0 %v1010
        %v1012 = vpop.xlane.xlu0 %1011
        %v1013 = vsub.f32 %v1005, %v1012
        %v1014 = vmul.f32 %v1013, 1.442695
        %v1015 = vpow.pop %v1014
        %v1016 = vsel %vm852, %v1015, 0.0
        %1017 = vadd.xlane.f32.xlu0 %v1016
        %v1018 = vpop.xlane.xlu0 %1017
        %v1019 = vrcp.pop %v1018
        %v1020 = vmul.f32 %v1015, %v1019
        %v1021 = vpack.c.bf16 %v1020, %v1020
        %1023 = vrot.lane.b32.xlu0 %v851, 120
        %v1024 = vpop.permute.xlu0 %1023
        %v1026 = vsel %vm852, %v1021, 0
        %v1029 = vsel %vm914, %v1024, 0
        %1031 = vmatprep.subr.bf16.mxu0 0
        %1032 = vmatpush1.bf16.msra.mxu0 0
        %1033 = vmatprep.subr.bf16.mxu0 0
        %1034 = vmatpush1.bf16.msra.mxu0 0
        %1035 = vmatprep.subr.bf16.mxu0 0
        %1036 = vmatpush1.bf16.msra.mxu0 0
        %1037 = vmatprep.subr.bf16.mxu0 0
        %1038 = vmatpush1.bf16.msra.mxu0 0
        %1039 = vmatprep.subr.bf16.mxu0 0
        %1040 = vmatpush1.bf16.msra.mxu0 0
        %1041 = vmatprep.subr.bf16.mxu0 0
        %1042 = vmatpush1.bf16.msra.mxu0 0
        %1043 = vmatprep.subr.bf16.mxu0 0
        %1044 = vmatpush1.bf16.msra.mxu0 0
        %1045 = vmatprep.subr.bf16.mxu0 0
        %1046 = vmatpush1.bf16.msra.mxu0 %v1029
        %1047 = vmatprep.subr.bf16.mxu0 0
        %1048 = vmatpush2.bf16.msra.mxu0 0
        %1049 = vmatprep.subr.bf16.mxu0 0
        %1050 = vmatpush2.bf16.msra.mxu0 0
        %1051 = vmatprep.subr.bf16.mxu0 0
        %1052 = vmatpush2.bf16.msra.mxu0 0
        %1053 = vmatprep.subr.bf16.mxu0 0
        %1054 = vmatpush2.bf16.msra.mxu0 0
        %1055 = vmatprep.subr.bf16.mxu0 0
        %1056 = vmatpush2.bf16.msra.mxu0 0
        %1057 = vmatprep.subr.bf16.mxu0 0
        %1058 = vmatpush2.bf16.msra.mxu0 0
        %1059 = vmatprep.subr.bf16.mxu0 0
        %1060 = vmatpush2.bf16.msra.mxu0 0
        %1061 = vmatprep.subr.bf16.mxu0 0
        %1062 = vmatpush2.bf16.msra.mxu0 0
        %1063 = vmatprep.mubr.bf16.mxu0 0
        %1064 = vmatmul.mubr.bf16.gmra.mxu0 %v1026
        %v1065 = vpop.f32.mrf.mxu0
        %v1066 = vadd.f32 0.0, %v1065
        %v1067 = vpop.f32.mrf.mxu0
        %v1068 = vpop.f32.mrf.mxu0
        %v1069 = vpop.f32.mrf.mxu0
        %1070 = vdwg.mxu0
        %1071 = vrot.lane.b32.xlu0 %v849, 112
        %v1072 = vpop.permute.xlu0 %1071
        %1073 = vrot.lane.b32.xlu0 %v850, 112
        %v1074 = vpop.permute.xlu0 %1073
        %v1076 = vsel %vm852, %v1072, 0
        %v1079 = vsel %vm852, %v1074, 0
        %1081 = vmatprep.subr.bf16.mxu0 0
        %1082 = vmatpush1.bf16.xpose.msra.mxu0 0
        %1083 = vmatprep.subr.bf16.mxu0 0
        %1084 = vmatpush1.bf16.xpose.msra.mxu0 0
        %1085 = vmatprep.subr.bf16.mxu0 0
        %1086 = vmatpush1.bf16.xpose.msra.mxu0 0
        %1087 = vmatprep.subr.bf16.mxu0 0
        %1088 = vmatpush1.bf16.xpose.msra.mxu0 0
        %1089 = vmatprep.subr.bf16.mxu0 0
        %1090 = vmatpush1.bf16.xpose.msra.mxu0 0
        %1091 = vmatprep.subr.bf16.mxu0 0
        %1092 = vmatpush1.bf16.xpose.msra.mxu0 0
        %1093 = vmatprep.subr.bf16.mxu0 0
        %1094 = vmatpush1.bf16.xpose.msra.mxu0 0
        %1095 = vmatprep.subr.bf16.mxu0 0
        %1096 = vmatpush1.bf16.xpose.msra.mxu0 %v1079
        %1097 = vmatprep.subr.bf16.mxu0 0
        %1098 = vmatpush2.bf16.xpose.msra.mxu0 0
        %1099 = vmatprep.subr.bf16.mxu0 0
        %1100 = vmatpush2.bf16.xpose.msra.mxu0 0
        %1101 = vmatprep.subr.bf16.mxu0 0
        %1102 = vmatpush2.bf16.xpose.msra.mxu0 0
        %1103 = vmatprep.subr.bf16.mxu0 0
        %1104 = vmatpush2.bf16.xpose.msra.mxu0 0
        %1105 = vmatprep.subr.bf16.mxu0 0
        %1106 = vmatpush2.bf16.xpose.msra.mxu0 0
        %1107 = vmatprep.subr.bf16.mxu0 0
        %1108 = vmatpush2.bf16.xpose.msra.mxu0 0
        %1109 = vmatprep.subr.bf16.mxu0 0
        %1110 = vmatpush2.bf16.xpose.msra.mxu0 0
        %1111 = vmatprep.subr.bf16.mxu0 0
        %1112 = vmatpush2.bf16.xpose.msra.mxu0 0
        %1113 = vmatprep.mubr.bf16.mxu0 0
        %1114 = vmatmul.mubr.bf16.gmra.mxu0 %v1076
        %v1115 = vpop.f32.mrf.mxu0
        %v1116 = vadd.f32 0.0, %v1115
        %v1117 = vpop.f32.mrf.mxu0
        %v1118 = vpop.f32.mrf.mxu0
        %v1119 = vpop.f32.mrf.mxu0
        %1120 = vdwg.mxu0
        %v1121 = vsel %vm852, %v1116, -inf
        %1122 = vmax.xlane.f32.xlu0 %v1121
        %v1123 = vpop.xlane.xlu0 %1122
        %v1124 = vsub.f32 %v1116, %v1123
        %v1125 = vmul.f32 %v1124, 1.442695
        %v1126 = vpow.pop %v1125
        %v1127 = vsel %vm852, %v1126, 0.0
        %1128 = vadd.xlane.f32.xlu0 %v1127
        %v1129 = vpop.xlane.xlu0 %1128
        %v1130 = vrcp.pop %v1129
        %v1131 = vmul.f32 %v1126, %v1130
        %v1132 = vpack.c.bf16 %v1131, %v1131
        %1133 = vrot.lane.b32.xlu0 %v851, 112
        %v1134 = vpop.permute.xlu0 %1133
        %v1136 = vsel %vm852, %v1132, 0
        %v1139 = vsel %vm914, %v1134, 0
        %1141 = vmatprep.subr.bf16.mxu0 0
        %1142 = vmatpush1.bf16.msra.mxu0 0
        %1143 = vmatprep.subr.bf16.mxu0 0
        %1144 = vmatpush1.bf16.msra.mxu0 0
        %1145 = vmatprep.subr.bf16.mxu0 0
        %1146 = vmatpush1.bf16.msra.mxu0 0
        %1147 = vmatprep.subr.bf16.mxu0 0
        %1148 = vmatpush1.bf16.msra.mxu0 0
        %1149 = vmatprep.subr.bf16.mxu0 0
        %1150 = vmatpush1.bf16.msra.mxu0 0
        %1151 = vmatprep.subr.bf16.mxu0 0
        %1152 = vmatpush1.bf16.msra.mxu0 0
        %1153 = vmatprep.subr.bf16.mxu0 0
        %1154 = vmatpush1.bf16.msra.mxu0 0
        %1155 = vmatprep.subr.bf16.mxu0 0
        %1156 = vmatpush1.bf16.msra.mxu0 %v1139
        %1157 = vmatprep.subr.bf16.mxu0 0
        %1158 = vmatpush2.bf16.msra.mxu0 0
        %1159 = vmatprep.subr.bf16.mxu0 0
        %1160 = vmatpush2.bf16.msra.mxu0 0
        %1161 = vmatprep.subr.bf16.mxu0 0
        %1162 = vmatpush2.bf16.msra.mxu0 0
        %1163 = vmatprep.subr.bf16.mxu0 0
        %1164 = vmatpush2.bf16.msra.mxu0 0
        %1165 = vmatprep.subr.bf16.mxu0 0
        %1166 = vmatpush2.bf16.msra.mxu0 0
        %1167 = vmatprep.subr.bf16.mxu0 0
        %1168 = vmatpush2.bf16.msra.mxu0 0
        %1169 = vmatprep.subr.bf16.mxu0 0
        %1170 = vmatpush2.bf16.msra.mxu0 0
        %1171 = vmatprep.subr.bf16.mxu0 0
        %1172 = vmatpush2.bf16.msra.mxu0 0
        %1173 = vmatprep.mubr.bf16.mxu0 0
        %1174 = vmatmul.mubr.bf16.gmra.mxu0 %v1136
        %v1175 = vpop.f32.mrf.mxu0
        %v1176 = vadd.f32 0.0, %v1175
        %v1177 = vpop.f32.mrf.mxu0
        %v1178 = vpop.f32.mrf.mxu0
        %v1179 = vpop.f32.mrf.mxu0
        %1180 = vdwg.mxu0
        %1181 = vrot.lane.b32.xlu0 %v849, 104
        %v1182 = vpop.permute.xlu0 %1181
        %1183 = vrot.lane.b32.xlu0 %v850, 104
        %v1184 = vpop.permute.xlu0 %1183
        %v1186 = vsel %vm852, %v1182, 0
        %v1189 = vsel %vm852, %v1184, 0
        %1191 = vmatprep.subr.bf16.mxu0 0
        %1192 = vmatpush1.bf16.xpose.msra.mxu0 0
        %1193 = vmatprep.subr.bf16.mxu0 0
        %1194 = vmatpush1.bf16.xpose.msra.mxu0 0
        %1195 = vmatprep.subr.bf16.mxu0 0
        %1196 = vmatpush1.bf16.xpose.msra.mxu0 0
        %1197 = vmatprep.subr.bf16.mxu0 0
        %1198 = vmatpush1.bf16.xpose.msra.mxu0 0
        %1199 = vmatprep.subr.bf16.mxu0 0
        %1200 = vmatpush1.bf16.xpose.msra.mxu0 0
        %1201 = vmatprep.subr.bf16.mxu0 0
        %1202 = vmatpush1.bf16.xpose.msra.mxu0 0
        %1203 = vmatprep.subr.bf16.mxu0 0
        %1204 = vmatpush1.bf16.xpose.msra.mxu0 0
        %1205 = vmatprep.subr.bf16.mxu0 0
        %1206 = vmatpush1.bf16.xpose.msra.mxu0 %v1189
        %1207 = vmatprep.subr.bf16.mxu0 0
        %1208 = vmatpush2.bf16.xpose.msra.mxu0 0
        %1209 = vmatprep.subr.bf16.mxu0 0
        %1210 = vmatpush2.bf16.xpose.msra.mxu0 0
        %1211 = vmatprep.subr.bf16.mxu0 0
        %1212 = vmatpush2.bf16.xpose.msra.mxu0 0
        %1213 = vmatprep.subr.bf16.mxu0 0
        %1214 = vmatpush2.bf16.xpose.msra.mxu0 0
        %1215 = vmatprep.subr.bf16.mxu0 0
        %1216 = vmatpush2.bf16.xpose.msra.mxu0 0
        %1217 = vmatprep.subr.bf16.mxu0 0
        %1218 = vmatpush2.bf16.xpose.msra.mxu0 0
        %1219 = vmatprep.subr.bf16.mxu0 0
        %1220 = vmatpush2.bf16.xpose.msra.mxu0 0
        %1221 = vmatprep.subr.bf16.mxu0 0
        %1222 = vmatpush2.bf16.xpose.msra.mxu0 0
        %1223 = vmatprep.mubr.bf16.mxu0 0
        %1224 = vmatmul.mubr.bf16.gmra.mxu0 %v1186
        %v1225 = vpop.f32.mrf.mxu0
        %v1226 = vadd.f32 0.0, %v1225
        %v1227 = vpop.f32.mrf.mxu0
        %v1228 = vpop.f32.mrf.mxu0
        %v1229 = vpop.f32.mrf.mxu0
        %1230 = vdwg.mxu0
        %v1231 = vsel %vm852, %v1226, -inf
        %1232 = vmax.xlane.f32.xlu0 %v1231
        %v1233 = vpop.xlane.xlu0 %1232
        %v1234 = vsub.f32 %v1226, %v1233
        %v1235 = vmul.f32 %v1234, 1.442695
        %v1236 = vpow.pop %v1235
        %v1237 = vsel %vm852, %v1236, 0.0
        %1238 = vadd.xlane.f32.xlu0 %v1237
        %v1239 = vpop.xlane.xlu0 %1238
        %v1240 = vrcp.pop %v1239
        %v1241 = vmul.f32 %v1236, %v1240
        %v1242 = vpack.c.bf16 %v1241, %v1241
        %1243 = vrot.lane.b32.xlu0 %v851, 104
        %v1244 = vpop.permute.xlu0 %1243
        %v1246 = vsel %vm852, %v1242, 0
        %v1249 = vsel %vm914, %v1244, 0
        %1251 = vmatprep.subr.bf16.mxu0 0
        %1252 = vmatpush1.bf16.msra.mxu0 0
        %1253 = vmatprep.subr.bf16.mxu0 0
        %1254 = vmatpush1.bf16.msra.mxu0 0
        %1255 = vmatprep.subr.bf16.mxu0 0
        %1256 = vmatpush1.bf16.msra.mxu0 0
        %1257 = vmatprep.subr.bf16.mxu0 0
        %1258 = vmatpush1.bf16.msra.mxu0 0
        %1259 = vmatprep.subr.bf16.mxu0 0
        %1260 = vmatpush1.bf16.msra.mxu0 0
        %1261 = vmatprep.subr.bf16.mxu0 0
        %1262 = vmatpush1.bf16.msra.mxu0 0
        %1263 = vmatprep.subr.bf16.mxu0 0
        %1264 = vmatpush1.bf16.msra.mxu0 0
        %1265 = vmatprep.subr.bf16.mxu0 0
        %1266 = vmatpush1.bf16.msra.mxu0 %v1249
        %1267 = vmatprep.subr.bf16.mxu0 0
        %1268 = vmatpush2.bf16.msra.mxu0 0
        %1269 = vmatprep.subr.bf16.mxu0 0
        %1270 = vmatpush2.bf16.msra.mxu0 0
        %1271 = vmatprep.subr.bf16.mxu0 0
        %1272 = vmatpush2.bf16.msra.mxu0 0
        %1273 = vmatprep.subr.bf16.mxu0 0
        %1274 = vmatpush2.bf16.msra.mxu0 0
        %1275 = vmatprep.subr.bf16.mxu0 0
        %1276 = vmatpush2.bf16.msra.mxu0 0
        %1277 = vmatprep.subr.bf16.mxu0 0
        %1278 = vmatpush2.bf16.msra.mxu0 0
        %1279 = vmatprep.subr.bf16.mxu0 0
        %1280 = vmatpush2.bf16.msra.mxu0 0
        %1281 = vmatprep.subr.bf16.mxu0 0
        %1282 = vmatpush2.bf16.msra.mxu0 0
        %1283 = vmatprep.mubr.bf16.mxu0 0
        %1284 = vmatmul.mubr.bf16.gmra.mxu0 %v1246
        %v1285 = vpop.f32.mrf.mxu0
        %v1286 = vadd.f32 0.0, %v1285
        %v1287 = vpop.f32.mrf.mxu0
        %v1288 = vpop.f32.mrf.mxu0
        %v1289 = vpop.f32.mrf.mxu0
        %1290 = vdwg.mxu0
        %1292 = vrot.lane.b32.xlu0 %v1066, 8
        %v1293 = vpop.permute.xlu0 %1292
        %1296 = vrot.lane.b32.xlu0 %v1176, 16
        %v1297 = vpop.permute.xlu0 %1296
        %1300 = vrot.lane.b32.xlu0 %v1286, 24
        %v1301 = vpop.permute.xlu0 %1300
        %v1303 = vsel %vm852, %v953, %v1293
        %vm1304 = vcmask 130048
        %v1305 = vsel %vm1304, %v1303, %v1297
        %vm1306 = vcmask 195584
        %v1307 = vsel %vm1306, %v1305, %v1301
        %v1308 = vpack.c.bf16 %v1307, %v1307
        %v1309 = vld [vmem:[%s9] sm:$0xf]
        %v1310 = vld [vmem:[%s9 + $0x4] sm:$0xf]
        %v1311 = vld [vmem:[%s9 + $0x8] sm:$0xf]
        %v1312 = vld [vmem:[%s9 + $0xc] sm:$0xf]
        %v1313 = vld [vmem:[%s10] sm:$0x1]
        %v1315 = vlaneseq
        %v1316 = vshrl.u32 %v1315, 7
        %v1317 = vsub.s32 0, %v1316
        %v1318 = vrot.slane %v1313, %v1317
        %v1324 = vunpack.c.l.b16 %v1309
        %v1325 = vunpack.c.l.b16 %v1310
        %v1326 = vunpack.c.l.b16 %v1311
        %v1327 = vunpack.c.l.b16 %v1312
        %v1328 = vpack.c.b16 %v1325, %v1324
        %v1329 = vpack.c.b16 %v1327, %v1326
        %v1333 = vsel %vm671, %v1308, 0
        %1335 = vmatprep.subr.bf16.mxu0 0
        %1336 = vmatpush1.bf16.msra.mxu0 0
        %1337 = vmatprep.subr.bf16.mxu0 0
        %1338 = vmatpush1.bf16.msra.mxu0 0
        %1339 = vmatprep.subr.bf16.mxu0 0
        %1340 = vmatpush1.bf16.msra.mxu0 0
        %1341 = vmatprep.subr.bf16.mxu0 0
        %1342 = vmatpush1.bf16.msra.mxu0 0
        %1343 = vmatprep.subr.bf16.mxu0 0
        %1344 = vmatpush1.bf16.msra.mxu0 0
        %1345 = vmatprep.subr.bf16.mxu0 0
        %1346 = vmatpush1.bf16.msra.mxu0 0
        %1347 = vmatprep.subr.bf16.mxu0 0
        %1348 = vmatpush1.bf16.msra.mxu0 %v1329
        %1349 = vmatprep.subr.bf16.mxu0 0
        %1350 = vmatpush1.bf16.msra.mxu0 %v1328
        %1351 = vmatprep.subr.bf16.mxu0 0
        %1352 = vmatpush2.bf16.msra.mxu0 0
        %1353 = vmatprep.subr.bf16.mxu0 0
        %1354 = vmatpush2.bf16.msra.mxu0 0
        %1355 = vmatprep.subr.bf16.mxu0 0
        %1356 = vmatpush2.bf16.msra.mxu0 0
        %1357 = vmatprep.subr.bf16.mxu0 0
        %1358 = vmatpush2.bf16.msra.mxu0 0
        %1359 = vmatprep.subr.bf16.mxu0 0
        %1360 = vmatpush2.bf16.msra.mxu0 0
        %1361 = vmatprep.subr.bf16.mxu0 0
        %1362 = vmatpush2.bf16.msra.mxu0 0
        %1363 = vmatprep.subr.bf16.mxu0 0
        %1364 = vmatpush2.bf16.msra.mxu0 0
        %1365 = vmatprep.subr.bf16.mxu0 0
        %1366 = vmatpush2.bf16.msra.mxu0 0
        %1367 = vmatprep.mubr.bf16.mxu0 0
        %1368 = vmatmul.mubr.bf16.gmra.mxu0 %v1333
        %v1369 = vpop.f32.mrf.mxu0
        %v1370 = vadd.f32 %v1318, %v1369
        %v1371 = vpop.f32.mrf.mxu0
        %v1372 = vpop.f32.mrf.mxu0
        %v1373 = vpop.f32.mrf.mxu0
        %1374 = vdwg.mxu0
        %v1375 = vadd.f32 %v646, %v1370
        %v1376 = vsel %vm671, %v1375, 0.0
        %1377 = vadd.xlane.f32.xlu0 %v1376
        %v1378 = vpop.xlane.xlu0 %1377
        %v1379 = vrcp.pop 32.0
        %v1380 = vmul.f32 %v1378, %v1379
        %v1381 = vsub.f32 %v1375, %v1380
        %v1382 = vmul.f32 %v1381, %v1381
        %v1383 = vsel %vm671, %v1382, 0.0
        %1384 = vadd.xlane.f32.xlu0 %v1383
        %v1385 = vpop.xlane.xlu0 %1384
        %v1386 = vmul.f32 %v1385, %v1379
        %v1387 = vadd.f32 %v1386, 1e-05
        %v1388 = vrsqrt.pop %v1387
        %v1389 = vmul.f32 %v1381, %v1388
        %v1390 = vld [vmem:[%s11] sm:$0x1]
        %v1392 = vlaneseq
        %v1393 = vshrl.u32 %v1392, 7
        %v1394 = vsub.s32 0, %v1393
        %v1395 = vrot.slane %v1390, %v1394
        %v1397 = vmul.f32 %v1389, %v1395
        %v1398 = vld [vmem:[%s12] sm:$0x1]
        %v1400 = vlaneseq
        %v1401 = vshrl.u32 %v1400, 7
        %v1402 = vsub.s32 0, %v1401
        %v1403 = vrot.slane %v1398, %v1402
        %v1405 = vadd.f32 %v1397, %v1403
        %v1406 = vpack.c.bf16 %v1405, %v1405
        %v1407 = vld [vmem:[%s13] sm:$0xf]
        %v1408 = vld [vmem:[%s13 + $0x4] sm:$0xf]
        %v1409 = vld [vmem:[%s13 + $0x8] sm:$0xf]
        %v1410 = vld [vmem:[%s13 + $0xc] sm:$0xf]
        %v1411 = vld [vmem:[#allocation2] sm:$0x1]
        %v1413 = vlaneseq
        %v1414 = vshrl.u32 %v1413, 7
        %v1415 = vsub.s32 0, %v1414
        %v1416 = vrot.slane %v1411, %v1415
        %v1422 = vunpack.c.l.b16 %v1407
        %v1423 = vunpack.c.l.b16 %v1408
        %v1424 = vunpack.c.l.b16 %v1409
        %v1425 = vunpack.c.l.b16 %v1410
        %v1426 = vpack.c.b16 %v1423, %v1422
        %v1427 = vpack.c.b16 %v1425, %v1424
        %v1431 = vsel %vm671, %v1406, 0
        %1433 = vmatprep.subr.bf16.mxu0 0
        %1434 = vmatpush1.bf16.msra.mxu0 0
        %1435 = vmatprep.subr.bf16.mxu0 0
        %1436 = vmatpush1.bf16.msra.mxu0 0
        %1437 = vmatprep.subr.bf16.mxu0 0
        %1438 = vmatpush1.bf16.msra.mxu0 0
        %1439 = vmatprep.subr.bf16.mxu0 0
        %1440 = vmatpush1.bf16.msra.mxu0 0
        %1441 = vmatprep.subr.bf16.mxu0 0
        %1442 = vmatpush1.bf16.msra.mxu0 0
        %1443 = vmatprep.subr.bf16.mxu0 0
        %1444 = vmatpush1.bf16.msra.mxu0 0
        %1445 = vmatprep.subr.bf16.mxu0 0
        %1446 = vmatpush1.bf16.msra.mxu0 %v1427
        %1447 = vmatprep.subr.bf16.mxu0 0
        %1448 = vmatpush1.bf16.msra.mxu0 %v1426
        %1449 = vmatprep.subr.bf16.mxu0 0
        %1450 = vmatpush2.bf16.msra.mxu0 0
        %1451 = vmatprep.subr.bf16.mxu0 0
        %1452 = vmatpush2.bf16.msra.mxu0 0
        %1453 = vmatprep.subr.bf16.mxu0 0
        %1454 = vmatpush2.bf16.msra.mxu0 0
        %1455 = vmatprep.subr.bf16.mxu0 0
        %1456 = vmatpush2.bf16.msra.mxu0 0
        %1457 = vmatprep.subr.bf16.mxu0 0
        %1458 = vmatpush2.bf16.msra.mxu0 0
        %1459 = vmatprep.subr.bf16.mxu0 0
        %1460 = vmatpush2.bf16.msra.mxu0 0
        %1461 = vmatprep.subr.bf16.mxu0 0
        %1462 = vmatpush2.bf16.msra.mxu0 0
        %1463 = vmatprep.subr.bf16.mxu0 0
        %1464 = vmatpush2.bf16.msra.mxu0 0
        %1465 = vmatprep.mubr.bf16.mxu0 0
        %1466 = vmatmul.mubr.bf16.gmra.mxu0 %v1431
        %v1467 = vpop.f32.mrf.mxu0
        %v1468 = vadd.f32 %v1416, %v1467
        %v1469 = vpop.f32.mrf.mxu0
        %v1470 = vpop.f32.mrf.mxu0
        %v1471 = vpop.f32.mrf.mxu0
        %1472 = vdwg.mxu0
        %v1473 = vmax.f32 %v1468, 0.0
        %v1474 = vpack.c.bf16 %v1473, %v1473
        %v1475 = vld [vmem:[%s15] sm:$0xf]
        %v1476 = vld [vmem:[%s15 + $0x4] sm:$0xf]
        %v1477 = vld [vmem:[%s15 + $0x8] sm:$0xf]
        %v1478 = vld [vmem:[%s15 + $0xc] sm:$0xf]
        %v1479 = vld [vmem:[%s15 + $0x10] sm:$0xf]
        %v1480 = vld [vmem:[%s15 + $0x14] sm:$0xf]
        %v1481 = vld [vmem:[%s15 + $0x18] sm:$0xf]
        %v1482 = vld [vmem:[%s15 + $0x1c] sm:$0xf]
        %v1483 = vld [vmem:[%s15 + $0x20] sm:$0xf]
        %v1484 = vld [vmem:[%s15 + $0x24] sm:$0xf]
        %v1485 = vld [vmem:[%s15 + $0x28] sm:$0xf]
        %v1486 = vld [vmem:[%s15 + $0x2c] sm:$0xf]
        %v1487 = vld [vmem:[%s15 + $0x30] sm:$0xf]
        %v1488 = vld [vmem:[%s15 + $0x34] sm:$0xf]
        %v1489 = vld [vmem:[%s15 + $0x38] sm:$0xf]
        %v1490 = vld [vmem:[%s15 + $0x3c] sm:$0xf]
        %v1491 = vld [vmem:[%s16] sm:$0x1]
        %v1493 = vlaneseq
        %v1494 = vshrl.u32 %v1493, 7
        %v1495 = vsub.s32 0, %v1494
        %v1496 = vrot.slane %v1491, %v1495
        %v1514 = vunpack.c.l.b16 %v1475
        %v1515 = vunpack.c.l.b16 %v1476
        %v1516 = vunpack.c.l.b16 %v1477
        %v1517 = vunpack.c.l.b16 %v1478
        %v1518 = vunpack.c.l.b16 %v1479
        %v1519 = vunpack.c.l.b16 %v1480
        %v1520 = vunpack.c.l.b16 %v1481
        %v1521 = vunpack.c.l.b16 %v1482
        %v1522 = vunpack.c.l.b16 %v1483
        %v1523 = vunpack.c.l.b16 %v1484
        %v1524 = vunpack.c.l.b16 %v1485
        %v1525 = vunpack.c.l.b16 %v1486
        %v1526 = vunpack.c.l.b16 %v1487
        %v1527 = vunpack.c.l.b16 %v1488
        %v1528 = vunpack.c.l.b16 %v1489
        %v1529 = vunpack.c.l.b16 %v1490
        %v1530 = vpack.c.b16 %v1515, %v1514
        %v1531 = vpack.c.b16 %v1517, %v1516
        %v1532 = vpack.c.b16 %v1519, %v1518
        %v1533 = vpack.c.b16 %v1521, %v1520
        %v1534 = vpack.c.b16 %v1523, %v1522
        %v1535 = vpack.c.b16 %v1525, %v1524
        %v1536 = vpack.c.b16 %v1527, %v1526
        %v1537 = vpack.c.b16 %v1529, %v1528
        %1546 = vmatprep.subr.bf16.mxu0 0
        %1547 = vmatpush1.bf16.msra.mxu0 %v1537
        %1548 = vmatprep.subr.bf16.mxu0 0
        %1549 = vmatpush1.bf16.msra.mxu0 %v1536
        %1550 = vmatprep.subr.bf16.mxu0 0
        %1551 = vmatpush1.bf16.msra.mxu0 %v1535
        %1552 = vmatprep.subr.bf16.mxu0 0
        %1553 = vmatpush1.bf16.msra.mxu0 %v1534
        %1554 = vmatprep.subr.bf16.mxu0 0
        %1555 = vmatpush1.bf16.msra.mxu0 %v1533
        %1556 = vmatprep.subr.bf16.mxu0 0
        %1557 = vmatpush1.bf16.msra.mxu0 %v1532
        %1558 = vmatprep.subr.bf16.mxu0 0
        %1559 = vmatpush1.bf16.msra.mxu0 %v1531
        %1560 = vmatprep.subr.bf16.mxu0 0
        %1561 = vmatpush1.bf16.msra.mxu0 %v1530
        %1562 = vmatprep.subr.bf16.mxu0 0
        %1563 = vmatpush2.bf16.msra.mxu0 0
        %1564 = vmatprep.subr.bf16.mxu0 0
        %1565 = vmatpush2.bf16.msra.mxu0 0
        %1566 = vmatprep.subr.bf16.mxu0 0
        %1567 = vmatpush2.bf16.msra.mxu0 0
        %1568 = vmatprep.subr.bf16.mxu0 0
        %1569 = vmatpush2.bf16.msra.mxu0 0
        %1570 = vmatprep.subr.bf16.mxu0 0
        %1571 = vmatpush2.bf16.msra.mxu0 0
        %1572 = vmatprep.subr.bf16.mxu0 0
        %1573 = vmatpush2.bf16.msra.mxu0 0
        %1574 = vmatprep.subr.bf16.mxu0 0
        %1575 = vmatpush2.bf16.msra.mxu0 0
        %1576 = vmatprep.subr.bf16.mxu0 0
        %1577 = vmatpush2.bf16.msra.mxu0 0
        %1578 = vmatprep.mubr.bf16.mxu0 0
        %1579 = vmatmul.mubr.bf16.gmra.mxu0 %v1474
        %v1580 = vpop.f32.mrf.mxu0
        %v1581 = vadd.f32 %v1496, %v1580
        %v1582 = vpop.f32.mrf.mxu0
        %v1583 = vpop.f32.mrf.mxu0
        %v1584 = vpop.f32.mrf.mxu0
        %1585 = vdwg.mxu0
        %v1586 = vadd.f32 %v1405, %v1581
        %v1587 = vsel %vm671, %v1586, 0.0
        %1588 = vadd.xlane.f32.xlu0 %v1587
        %v1589 = vpop.xlane.xlu0 %1588
        %v1590 = vmul.f32 %v1589, %v1379
        %v1591 = vsub.f32 %v1586, %v1590
        %v1592 = vmul.f32 %v1591, %v1591
        %v1593 = vsel %vm671, %v1592, 0.0
        %1594 = vadd.xlane.f32.xlu0 %v1593
        %v1595 = vpop.xlane.xlu0 %1594
        %v1596 = vmul.f32 %v1595, %v1379
        %v1597 = vadd.f32 %v1596, 1e-05
        %v1598 = vrsqrt.pop %v1597
        %v1599 = vmul.f32 %v1591, %v1598
        %v1600 = vld [vmem:[%s17] sm:$0x1]
        %v1602 = vlaneseq
        %v1603 = vshrl.u32 %v1602, 7
        %v1604 = vsub.s32 0, %v1603
        %v1605 = vrot.slane %v1600, %v1604
        %v1607 = vmul.f32 %v1599, %v1605
        %v1608 = vld [vmem:[%s18] sm:$0x1]
        %v1610 = vlaneseq
        %v1611 = vshrl.u32 %v1610, 7
        %v1612 = vsub.s32 0, %v1611
        %v1613 = vrot.slane %v1608, %v1612
        %v1615 = vadd.f32 %v1607, %v1613
        %1616 = vst.msk [vmem:[%s632] sm:$0xff] %vm671, %v1615
        %s1617 = sand.u32 %s456, 1
        %s1618 = scalar_lea.sflag [#allocation4], %s1617
        %s1619 = sand.u32 %s456, 1
        %s1620 = smul.addr %s1619, 8
        %s1621 = scalar_lea.vmem [#allocation5], %s1620
        // Predicated region
        $region101: #{encoder_layer.1} parent=95 // pred_check
          %p1622 = pneg %p466
        $region102: #{encoder_layer.1} parent=95 // pred_check_branch
          %1624 = sbr.rel (%p1622) target = $region104
        $region103: #{encoder_layer.1} parent=95 // pred_region
          %s1626 = ssub.s32 128, 128
          %1627 = vsyncadd %s1618, %s1626
          %s1628 = smul.addr %s34, 128
          %s1629 = scalar_lea.hbm %s19, %s1628
          %s1631 = sshll.u32 %s1621, 4
          %s1632 = int_to_ptr.vmem [resolvable:$true] %s1631
          %1634 = dma.vmem_to_hbm [thread:$0]  %s1632, 128, %s1629, %s1618
        $region104: #{encoder_layer.1} parent=95 // pred_fallthru
          _
      $region96: #{encoder_layer.1} parent=5 // pred_fallthru
        _
      %p1635 = scmp.le.s32.totalorder 2, %s29
      // Predicated region
      $region105: #{encoder_layer.1} parent=5 // pred_check
        %p1636 = pneg %p1635
      $region106: #{encoder_layer.1} parent=5 // pred_check_branch
        %1638 = sbr.rel (%p1636) target = $region108
      $region107: #{encoder_layer.1} parent=5 // pred_region
        %s1639 = ssub.s32 %s29, 2
        // Predicated region
        $region109: #{encoder_layer.1} parent=107 // pred_check
          %p1640 = pneg %p472
        $region110: #{encoder_layer.1} parent=107 // pred_check_branch
          %1642 = sbr.rel (%p1640) target = $region112
        $region111: #{encoder_layer.1} parent=107 // pred_region
          %s1643 = sand.u32 %s457, 1
          %s1644 = scalar_lea.sflag [#allocation4], %s1643
          %s1645 = sand.u32 %s457, 1
          %s1646 = smul.addr %s1645, 8
          %s1647 = scalar_lea.vmem [#allocation5], %s1646
          %1648 = dma.done %s1644, 128
        $region112: #{encoder_layer.1} parent=107 // pred_fallthru
          _
      $region108: #{encoder_layer.1} parent=5 // pred_fallthru
        _
    $region6: #{encoder_layer.1} parent=1 // loop_footer
      %s33 = sadd.s32 1, %s29
    $region7: #{encoder_layer.1} parent=1 // loop_footer_branch
      %28 = sbr.rel target = $region3
    $region8: #{encoder_layer.1} parent=1 // loop_exit
      _
    %1649 = vsyncpa [#allocation3], 1
    %s1650 = scalar_lea.sflag [#allocation3], 1
    %1651 = vsyncpa %s1650, 1
    %1652 = vsyncpa [#allocation4], 1
    %s1653 = scalar_lea.sflag [#allocation4], 1
    %1654 = vsyncpa %s1653, 1

</llo_original>
